<compile_context>
chip_gen: v5e
topology: v5e:2x2
jax: 0.10.0
libtpu: 0.0.40
codegen_flags: <defaults>
</compile_context>

<pallas_src>
import functools

import jax
import jax.numpy as jnp
from jax.experimental import pallas as pl
from jax.experimental.pallas import tpu as pltpu


def _basic_block_kernel(x_ref, w1_ref, b1_ref, w2_ref, b2_ref, out_ref,
                        *, H, W, C, TH):
    """Fused BasicBlock forward for one (image, row-tile) grid step.

    x_ref  : (H+4, W*C)      zero-row-padded image, lane-dense, resident per n
    w1_ref : (9*W*C, W*C)    conv1 weight (BN1 folded), per-tap block-diagonal
    b1_ref : (1, W*C)        folded BN1 bias, lane-tiled
    w2_ref : (9*W*C, W*C)    conv2 weight (BN2 folded), per-tap block-diagonal
    b2_ref : (1, W*C)        folded BN2 bias, lane-tiled
    out_ref: (TH, W*C)       lane-dense output row tile
    """
    r = pl.program_id(1)
    row0 = pl.multiple_of(r * TH, TH)
    L = W * C

    # Hoisted lane masks for the column (dx) boundary padding.
    lane = jax.lax.broadcasted_iota(jnp.int32, (1, L), 1)
    keep_l = lane >= C          # kx=0 tap reads column w-1 -> invalid at w==0
    keep_r = lane < L - C       # kx=2 tap reads column w+1 -> invalid at w==W-1

    def taps9(rows3):
        """rows3[ky]: ky-row-shifted window; returns (rows, 9*W*C) operand."""
        ts = []
        for ky in range(3):
            xd = rows3[ky]
            ts.append(jnp.where(keep_l, pltpu.roll(xd, C, axis=1), 0))      # kx=0
            ts.append(xd)                                                   # kx=1
            ts.append(jnp.where(keep_r, pltpu.roll(xd, L - C, axis=1), 0))  # kx=2
        return jnp.concatenate(ts, axis=1)

    # Input window: rows [row0, row0 + TH + 4) of the padded image
    # (= global rows [row0-2, row0+TH+2), zero outside the image).
    xt = x_ref[pl.ds(row0, TH + 4), :]                      # (TH+4, W*C)

    # ---- conv1 (+ folded BN1) + ReLU over TH+2 rows (1-row halo for conv2) --
    x_rows = [xt[ky:ky + TH + 2, :] for ky in range(3)]
    mid = jnp.dot(taps9(x_rows), w1_ref[...],
                  preferred_element_type=jnp.float32)       # (TH+2, W*C)
    mid = jnp.maximum(mid + b1_ref[...], 0.0)

    # Rows of `mid` outside the image act as conv2's spatial zero padding.
    g = row0 - 1 + jax.lax.broadcasted_iota(jnp.int32, (TH + 2, 1), 0)
    mid = jnp.where((g >= 0) & (g < H), mid, 0.0)
    mid = mid.astype(w2_ref.dtype)

    # ---- conv2 (+ folded BN2) + identity residual + ReLU --------------------
    m_rows = [mid[ky:ky + TH, :] for ky in range(3)]
    out = jnp.dot(taps9(m_rows), w2_ref[...],
                  preferred_element_type=jnp.float32)       # (TH, W*C)
    res = xt[2:TH + 2, :].astype(jnp.float32)               # identity (rows of x)
    out = jnp.maximum(out + b2_ref[...] + res, 0.0)
    out_ref[...] = out.astype(out_ref.dtype)


def _fold_bn(gamma, beta, mean, var, eps=1e-5):
    scale = gamma / jnp.sqrt(var + eps)            # (C,)
    bias = beta - mean * scale                     # (C,)
    return scale, bias


def _fold_weight(w, scale):
    # PyTorch (Cout, Cin, 3, 3) -> (3, 3, Cin, Cout) with BN scale folded in.
    return jnp.transpose(w, (2, 3, 1, 0)) * scale


def _block_diag_weight(w_hwio, W):
    """(3, 3, Cin, Cout) -> (9*W*Cin, W*Cout) per-tap block-diagonal weight.

    Row index = tap*(W*Cin) + w*Cin + ci matches the lane-dense, lane-concat
    operand built in the kernel; col index = w*Cout + co is the lane-dense
    output layout.  Off-diagonal (w_in != w_out) blocks are zero.
    """
    kh, kw, ci, co = w_hwio.shape
    taps = w_hwio.reshape(kh * kw, ci, co)
    eye = jnp.eye(W, dtype=w_hwio.dtype)
    big = jnp.einsum('wv,tio->twivo', eye, taps)   # (9, W, ci, W, co)
    return big.reshape(kh * kw * W * ci, W * co)


def basic_block_forward(x_nchw, params, *, tile_h=None, eps=1e-5,
                        compute_dtype=jnp.float32):
    """BasicBlock.forward (stride=1, downsample=None). NCHW in / NCHW out."""
    N, C, H, W = x_nchw.shape
    Cout = params["conv1_w"].shape[0]
    assert C == Cout, "identity residual requires inplanes == planes"
    L = W * C

    # Row-tile height: full image by default (toy sizes). For large H pick the
    # biggest multiple of 8 whose (TH+4)-row window fits the VMEM budget
    # (re-derive for v7x's 64 MiB; halo recompute is 2/(TH+2) of conv1 work).
    if tile_h is not None and H % tile_h == 0 and tile_h % 8 == 0:
        TH = tile_h
    else:
        TH = H

    s1, b1 = _fold_bn(params["bn1_gamma"], params["bn1_beta"],
                      params["bn1_mean"], params["bn1_var"], eps)
    s2, b2 = _fold_bn(params["bn2_gamma"], params["bn2_beta"],
                      params["bn2_mean"], params["bn2_var"], eps)
    w1b = _block_diag_weight(_fold_weight(params["conv1_w"], s1), W)
    w2b = _block_diag_weight(_fold_weight(params["conv2_w"], s2), W)
    w1b = w1b.astype(compute_dtype)
    w2b = w2b.astype(compute_dtype)
    b1r = jnp.tile(b1, W).reshape(1, L).astype(jnp.float32)   # lane-tiled bias
    b2r = jnp.tile(b2, W).reshape(1, L).astype(jnp.float32)

    # NCHW -> lane-dense (N, H+4, W*C) with a 2-row zero halo top/bottom.
    x = jnp.transpose(x_nchw, (0, 2, 3, 1))
    x = jnp.pad(x, ((0, 0), (2, 2), (0, 0), (0, 0)))
    x = x.reshape(N, H + 4, L).astype(compute_dtype)

    kernel = functools.partial(_basic_block_kernel, H=H, W=W, C=C, TH=TH)

    # Note: constant operands (weights/biases) could be single-buffered via
    # pipeline_mode=pl.Buffered(1) for large C; negligible at these sizes.
    out = pl.pallas_call(
        kernel,
        out_shape=jax.ShapeDtypeStruct((N, H, L), x_nchw.dtype),
        grid_spec=pltpu.PrefetchScalarGridSpec(
            num_scalar_prefetch=0,
            grid=(N, H // TH),
            in_specs=[
                pl.BlockSpec((None, H + 4, L), lambda n, r: (n, 0, 0)),
                pl.BlockSpec((9 * L, L), lambda n, r: (0, 0)),
                pl.BlockSpec((1, L), lambda n, r: (0, 0)),
                pl.BlockSpec((9 * L, L), lambda n, r: (0, 0)),
                pl.BlockSpec((1, L), lambda n, r: (0, 0)),
            ],
            out_specs=pl.BlockSpec((None, TH, L), lambda n, r: (n, r, 0)),
        ),
        compiler_params=pltpu.CompilerParams(
            dimension_semantics=("parallel", "parallel")),
    )(x, w1b, b1r, w2b, b2r)

    return jnp.transpose(out.reshape(N, H, W, Cout), (0, 3, 1, 2))


def basic_block_reference(x_nchw, params, eps=1e-5):
    """Pure-JAX reference (lax conv) for correctness checking."""
    x = jnp.transpose(x_nchw, (0, 2, 3, 1))

    def conv(t, w):
        w_hwio = jnp.transpose(w, (2, 3, 1, 0))
        return jax.lax.conv_general_dilated(
            t, w_hwio, window_strides=(1, 1), padding=((1, 1), (1, 1)),
            dimension_numbers=("NHWC", "HWIO", "NHWC"))

    def bn(t, g, b, m, v):
        return (t - m) / jnp.sqrt(v + eps) * g + b

    out = conv(x, params["conv1_w"])
    out = bn(out, params["bn1_gamma"], params["bn1_beta"],
             params["bn1_mean"], params["bn1_var"])
    out = jnp.maximum(out, 0.0)
    out = conv(out, params["conv2_w"])
    out = bn(out, params["bn2_gamma"], params["bn2_beta"],
             params["bn2_mean"], params["bn2_var"])
    out = out + x
    out = jnp.maximum(out, 0.0)
    return jnp.transpose(out, (0, 3, 1, 2))


if __name__ == "__main__":
    # batch=2, inplanes=planes=8, spatial=16 (identity residual path; W*C=128).
    N, C, H, W = 2, 8, 16, 16
    planes = C

    key = jax.random.PRNGKey(0)
    k = jax.random.split(key, 8)
    x = jax.random.normal(k[0], (N, C, H, W), dtype=jnp.float32)

    params = {
        "conv1_w": 0.1 * jax.random.normal(k[1], (planes, C, 3, 3), jnp.float32),
        "bn1_gamma": 1.0 + 0.1 * jax.random.normal(k[2], (planes,), jnp.float32),
        "bn1_beta": 0.1 * jax.random.normal(k[3], (planes,), jnp.float32),
        "bn1_mean": 0.05 * jax.random.normal(k[4], (planes,), jnp.float32),
        "bn1_var": jnp.abs(1.0 + 0.1 * jax.random.normal(k[5], (planes,), jnp.float32)),
        "conv2_w": 0.1 * jax.random.normal(k[6], (planes, planes, 3, 3), jnp.float32),
        "bn2_gamma": 1.0 + 0.1 * jax.random.normal(k[7], (planes,), jnp.float32),
        "bn2_beta": jnp.zeros((planes,), jnp.float32),
        "bn2_mean": jnp.zeros((planes,), jnp.float32),
        "bn2_var": jnp.ones((planes,), jnp.float32),
    }

    out = basic_block_forward(x, params)
    out = jax.block_until_ready(out)

    ref = basic_block_reference(x, params)
    assert out.shape == (N, planes, H, W)
    assert jnp.allclose(out, ref, rtol=1e-4, atol=1e-4), \
        float(jnp.max(jnp.abs(out - ref)))

    print("KERNEL_OK")
</pallas_src>

<mosaic_0001>
module attributes {stable_mosaic.version = 11 : i64} {
  func.func @_basic_block_kernel(%arg0: i32, %arg1: i32, %arg2: memref<1x20x128xf32, #tpu.memory_space<vmem>>, %arg3: memref<1152x128xf32, #tpu.memory_space<vmem>>, %arg4: memref<1x128xf32, #tpu.memory_space<vmem>>, %arg5: memref<1152x128xf32, #tpu.memory_space<vmem>>, %arg6: memref<1x128xf32, #tpu.memory_space<vmem>>, %arg7: memref<1x16x128xf32, #tpu.memory_space<vmem>>) attributes {dimension_semantics = [#tpu.dimension_semantics<parallel>, #tpu.dimension_semantics<parallel>], iteration_bounds = array<i64: 2, 1>, scalar_prefetch = 0 : i64, scratch_operands = 0 : i64, tpu.core_type = #tpu.core_type<tc>, window_params = [{transform_indices = @transform_0, window_bounds = array<i64: 1, 20, 128>}, {pipeline_mode = #tpu.pipeline_mode<synchronous>, transform_indices = @transform_1, window_bounds = array<i64: 1152, 128>}, {pipeline_mode = #tpu.pipeline_mode<synchronous>, transform_indices = @transform_2, window_bounds = array<i64: 1, 128>}, {pipeline_mode = #tpu.pipeline_mode<synchronous>, transform_indices = @transform_3, window_bounds = array<i64: 1152, 128>}, {pipeline_mode = #tpu.pipeline_mode<synchronous>, transform_indices = @transform_4, window_bounds = array<i64: 1, 128>}, {transform_indices = @transform_5, window_bounds = array<i64: 1, 16, 128>}]} {
    %c16_i32 = arith.constant 16 : i32
    %0 = arith.muli %arg1, %c16_i32 : i32
    %1 = tpu.assume_multiple %0, 16 : i32
    %2 = tpu.iota {dimensions = array<i32: 1>} : vector<1x128xi32>
    %c8_i32 = arith.constant 8 : i32
    %3 = vector.broadcast %c8_i32 : i32 to vector<1x128xi32>
    %4 = arith.cmpi sge, %2, %3 : vector<1x128xi32>
    %c120_i32 = arith.constant 120 : i32
    %5 = vector.broadcast %c120_i32 : i32 to vector<1x128xi32>
    %6 = arith.cmpi slt, %2, %5 : vector<1x128xi32>
    %c0 = arith.constant 0 : index
    %7 = arith.index_cast %1 : i32 to index
    %c0_0 = arith.constant 0 : index
    %8 = vector.load %arg2[%c0, %7, %c0_0] : memref<1x20x128xf32, #tpu.memory_space<vmem>>, vector<1x20x128xf32>
    %9 = vector.shape_cast %8 : vector<1x20x128xf32> to vector<20x128xf32>
    %10 = vector.extract_strided_slice %9 {offsets = [0, 0], sizes = [18, 128], strides = [1, 1]} : vector<20x128xf32> to vector<18x128xf32>
    %11 = vector.extract_strided_slice %9 {offsets = [1, 0], sizes = [18, 128], strides = [1, 1]} : vector<20x128xf32> to vector<18x128xf32>
    %12 = vector.extract_strided_slice %9 {offsets = [2, 0], sizes = [18, 128], strides = [1, 1]} : vector<20x128xf32> to vector<18x128xf32>
    %c8_i32_1 = arith.constant 8 : i32
    %13 = tpu.dynamic_rotate %10 by %c8_i32_1 dim 1 : vector<18x128xf32>, i32 -> vector<18x128xf32>
    %c0_i32 = arith.constant 0 : i32
    %14 = arith.sitofp %c0_i32 : i32 to f32
    %15 = vector.shape_cast %4 : vector<1x128xi1> to vector<1x128xi1>
    %16 = vector.broadcast %15 : vector<1x128xi1> to vector<18x128xi1>
    %17 = vector.broadcast %14 : f32 to vector<18x128xf32>
    %18 = arith.select %16, %13, %17 : vector<18x128xi1>, vector<18x128xf32>
    %c120_i32_2 = arith.constant 120 : i32
    %19 = tpu.dynamic_rotate %10 by %c120_i32_2 dim 1 : vector<18x128xf32>, i32 -> vector<18x128xf32>
    %c0_i32_3 = arith.constant 0 : i32
    %20 = arith.sitofp %c0_i32_3 : i32 to f32
    %21 = vector.shape_cast %6 : vector<1x128xi1> to vector<1x128xi1>
    %22 = vector.broadcast %21 : vector<1x128xi1> to vector<18x128xi1>
    %23 = vector.broadcast %20 : f32 to vector<18x128xf32>
    %24 = arith.select %22, %19, %23 : vector<18x128xi1>, vector<18x128xf32>
    %c8_i32_4 = arith.constant 8 : i32
    %25 = tpu.dynamic_rotate %11 by %c8_i32_4 dim 1 : vector<18x128xf32>, i32 -> vector<18x128xf32>
    %c0_i32_5 = arith.constant 0 : i32
    %26 = arith.sitofp %c0_i32_5 : i32 to f32
    %27 = vector.shape_cast %4 : vector<1x128xi1> to vector<1x128xi1>
    %28 = vector.broadcast %27 : vector<1x128xi1> to vector<18x128xi1>
    %29 = vector.broadcast %26 : f32 to vector<18x128xf32>
    %30 = arith.select %28, %25, %29 : vector<18x128xi1>, vector<18x128xf32>
    %c120_i32_6 = arith.constant 120 : i32
    %31 = tpu.dynamic_rotate %11 by %c120_i32_6 dim 1 : vector<18x128xf32>, i32 -> vector<18x128xf32>
    %c0_i32_7 = arith.constant 0 : i32
    %32 = arith.sitofp %c0_i32_7 : i32 to f32
    %33 = vector.shape_cast %6 : vector<1x128xi1> to vector<1x128xi1>
    %34 = vector.broadcast %33 : vector<1x128xi1> to vector<18x128xi1>
    %35 = vector.broadcast %32 : f32 to vector<18x128xf32>
    %36 = arith.select %34, %31, %35 : vector<18x128xi1>, vector<18x128xf32>
    %c8_i32_8 = arith.constant 8 : i32
    %37 = tpu.dynamic_rotate %12 by %c8_i32_8 dim 1 : vector<18x128xf32>, i32 -> vector<18x128xf32>
    %c0_i32_9 = arith.constant 0 : i32
    %38 = arith.sitofp %c0_i32_9 : i32 to f32
    %39 = vector.shape_cast %4 : vector<1x128xi1> to vector<1x128xi1>
    %40 = vector.broadcast %39 : vector<1x128xi1> to vector<18x128xi1>
    %41 = vector.broadcast %38 : f32 to vector<18x128xf32>
    %42 = arith.select %40, %37, %41 : vector<18x128xi1>, vector<18x128xf32>
    %c120_i32_10 = arith.constant 120 : i32
    %43 = tpu.dynamic_rotate %12 by %c120_i32_10 dim 1 : vector<18x128xf32>, i32 -> vector<18x128xf32>
    %c0_i32_11 = arith.constant 0 : i32
    %44 = arith.sitofp %c0_i32_11 : i32 to f32
    %45 = vector.shape_cast %6 : vector<1x128xi1> to vector<1x128xi1>
    %46 = vector.broadcast %45 : vector<1x128xi1> to vector<18x128xi1>
    %47 = vector.broadcast %44 : f32 to vector<18x128xf32>
    %48 = arith.select %46, %43, %47 : vector<18x128xi1>, vector<18x128xf32>
    %49 = tpu.concatenate %18, %10, %24, %30, %11, %36, %42, %12, %48 in 1 : vector<18x128xf32>, vector<18x128xf32>, vector<18x128xf32>, vector<18x128xf32>, vector<18x128xf32>, vector<18x128xf32>, vector<18x128xf32>, vector<18x128xf32>, vector<18x128xf32> -> vector<18x1152xf32>
    %c0_12 = arith.constant 0 : index
    %c0_13 = arith.constant 0 : index
    %50 = vector.load %arg3[%c0_12, %c0_13] : memref<1152x128xf32, #tpu.memory_space<vmem>>, vector<1152x128xf32>
    %cst = arith.constant dense<0.000000e+00> : vector<18x128xf32>
    %51 = tpu.matmul %49, %50, %cst {dimension_numbers = #tpu.dot_dimension_numbers<[1], [0], [0], [1], [0, 0, 1, 1], [], []>} : vector<18x1152xf32>, vector<1152x128xf32>, vector<18x128xf32> -> vector<18x128xf32>
    %c0_14 = arith.constant 0 : index
    %c0_15 = arith.constant 0 : index
    %52 = vector.load %arg4[%c0_14, %c0_15] : memref<1x128xf32, #tpu.memory_space<vmem>>, vector<1x128xf32>
    %53 = vector.broadcast %52 : vector<1x128xf32> to vector<18x128xf32>
    %54 = arith.addf %51, %53 : vector<18x128xf32>
    %cst_16 = arith.constant 0.000000e+00 : f32
    %55 = vector.broadcast %cst_16 : f32 to vector<18x128xf32>
    %56 = arith.maximumf %54, %55 : vector<18x128xf32>
    %c1_i32 = arith.constant 1 : i32
    %57 = arith.subi %1, %c1_i32 : i32
    %58 = tpu.iota {dimensions = array<i32: 0>} : vector<18x1xi32>
    %59 = vector.broadcast %57 : i32 to vector<18x1xi32>
    %60 = arith.addi %59, %58 : vector<18x1xi32>
    %c0_i32_17 = arith.constant 0 : i32
    %61 = vector.broadcast %c0_i32_17 : i32 to vector<18x1xi32>
    %62 = arith.cmpi sge, %60, %61 : vector<18x1xi32>
    %c16_i32_18 = arith.constant 16 : i32
    %63 = vector.broadcast %c16_i32_18 : i32 to vector<18x1xi32>
    %64 = arith.cmpi slt, %60, %63 : vector<18x1xi32>
    %65 = arith.andi %62, %64 : vector<18x1xi1>
    %cst_19 = arith.constant 0.000000e+00 : f32
    %66 = vector.shape_cast %65 : vector<18x1xi1> to vector<18x1xi1>
    %67 = vector.broadcast %66 : vector<18x1xi1> to vector<18x128xi1>
    %68 = vector.broadcast %cst_19 : f32 to vector<18x128xf32>
    %69 = arith.select %67, %56, %68 : vector<18x128xi1>, vector<18x128xf32>
    %70 = vector.extract_strided_slice %69 {offsets = [0, 0], sizes = [16, 128], strides = [1, 1]} : vector<18x128xf32> to vector<16x128xf32>
    %71 = vector.extract_strided_slice %69 {offsets = [1, 0], sizes = [16, 128], strides = [1, 1]} : vector<18x128xf32> to vector<16x128xf32>
    %72 = vector.extract_strided_slice %69 {offsets = [2, 0], sizes = [16, 128], strides = [1, 1]} : vector<18x128xf32> to vector<16x128xf32>
    %c8_i32_20 = arith.constant 8 : i32
    %73 = tpu.dynamic_rotate %70 by %c8_i32_20 dim 1 : vector<16x128xf32>, i32 -> vector<16x128xf32>
    %c0_i32_21 = arith.constant 0 : i32
    %74 = arith.sitofp %c0_i32_21 : i32 to f32
    %75 = vector.shape_cast %4 : vector<1x128xi1> to vector<1x128xi1>
    %76 = vector.broadcast %75 : vector<1x128xi1> to vector<16x128xi1>
    %77 = vector.broadcast %74 : f32 to vector<16x128xf32>
    %78 = arith.select %76, %73, %77 : vector<16x128xi1>, vector<16x128xf32>
    %c120_i32_22 = arith.constant 120 : i32
    %79 = tpu.dynamic_rotate %70 by %c120_i32_22 dim 1 : vector<16x128xf32>, i32 -> vector<16x128xf32>
    %c0_i32_23 = arith.constant 0 : i32
    %80 = arith.sitofp %c0_i32_23 : i32 to f32
    %81 = vector.shape_cast %6 : vector<1x128xi1> to vector<1x128xi1>
    %82 = vector.broadcast %81 : vector<1x128xi1> to vector<16x128xi1>
    %83 = vector.broadcast %80 : f32 to vector<16x128xf32>
    %84 = arith.select %82, %79, %83 : vector<16x128xi1>, vector<16x128xf32>
    %c8_i32_24 = arith.constant 8 : i32
    %85 = tpu.dynamic_rotate %71 by %c8_i32_24 dim 1 : vector<16x128xf32>, i32 -> vector<16x128xf32>
    %c0_i32_25 = arith.constant 0 : i32
    %86 = arith.sitofp %c0_i32_25 : i32 to f32
    %87 = vector.shape_cast %4 : vector<1x128xi1> to vector<1x128xi1>
    %88 = vector.broadcast %87 : vector<1x128xi1> to vector<16x128xi1>
    %89 = vector.broadcast %86 : f32 to vector<16x128xf32>
    %90 = arith.select %88, %85, %89 : vector<16x128xi1>, vector<16x128xf32>
    %c120_i32_26 = arith.constant 120 : i32
    %91 = tpu.dynamic_rotate %71 by %c120_i32_26 dim 1 : vector<16x128xf32>, i32 -> vector<16x128xf32>
    %c0_i32_27 = arith.constant 0 : i32
    %92 = arith.sitofp %c0_i32_27 : i32 to f32
    %93 = vector.shape_cast %6 : vector<1x128xi1> to vector<1x128xi1>
    %94 = vector.broadcast %93 : vector<1x128xi1> to vector<16x128xi1>
    %95 = vector.broadcast %92 : f32 to vector<16x128xf32>
    %96 = arith.select %94, %91, %95 : vector<16x128xi1>, vector<16x128xf32>
    %c8_i32_28 = arith.constant 8 : i32
    %97 = tpu.dynamic_rotate %72 by %c8_i32_28 dim 1 : vector<16x128xf32>, i32 -> vector<16x128xf32>
    %c0_i32_29 = arith.constant 0 : i32
    %98 = arith.sitofp %c0_i32_29 : i32 to f32
    %99 = vector.shape_cast %4 : vector<1x128xi1> to vector<1x128xi1>
    %100 = vector.broadcast %99 : vector<1x128xi1> to vector<16x128xi1>
    %101 = vector.broadcast %98 : f32 to vector<16x128xf32>
    %102 = arith.select %100, %97, %101 : vector<16x128xi1>, vector<16x128xf32>
    %c120_i32_30 = arith.constant 120 : i32
    %103 = tpu.dynamic_rotate %72 by %c120_i32_30 dim 1 : vector<16x128xf32>, i32 -> vector<16x128xf32>
    %c0_i32_31 = arith.constant 0 : i32
    %104 = arith.sitofp %c0_i32_31 : i32 to f32
    %105 = vector.shape_cast %6 : vector<1x128xi1> to vector<1x128xi1>
    %106 = vector.broadcast %105 : vector<1x128xi1> to vector<16x128xi1>
    %107 = vector.broadcast %104 : f32 to vector<16x128xf32>
    %108 = arith.select %106, %103, %107 : vector<16x128xi1>, vector<16x128xf32>
    %109 = tpu.concatenate %78, %70, %84, %90, %71, %96, %102, %72, %108 in 1 : vector<16x128xf32>, vector<16x128xf32>, vector<16x128xf32>, vector<16x128xf32>, vector<16x128xf32>, vector<16x128xf32>, vector<16x128xf32>, vector<16x128xf32>, vector<16x128xf32> -> vector<16x1152xf32>
    %c0_32 = arith.constant 0 : index
    %c0_33 = arith.constant 0 : index
    %110 = vector.load %arg5[%c0_32, %c0_33] : memref<1152x128xf32, #tpu.memory_space<vmem>>, vector<1152x128xf32>
    %cst_34 = arith.constant dense<0.000000e+00> : vector<16x128xf32>
    %111 = tpu.matmul %109, %110, %cst_34 {dimension_numbers = #tpu.dot_dimension_numbers<[1], [0], [0], [1], [0, 0, 1, 1], [], []>} : vector<16x1152xf32>, vector<1152x128xf32>, vector<16x128xf32> -> vector<16x128xf32>
    %112 = vector.extract_strided_slice %9 {offsets = [2, 0], sizes = [16, 128], strides = [1, 1]} : vector<20x128xf32> to vector<16x128xf32>
    %c0_35 = arith.constant 0 : index
    %c0_36 = arith.constant 0 : index
    %113 = vector.load %arg6[%c0_35, %c0_36] : memref<1x128xf32, #tpu.memory_space<vmem>>, vector<1x128xf32>
    %114 = vector.broadcast %113 : vector<1x128xf32> to vector<16x128xf32>
    %115 = arith.addf %111, %114 : vector<16x128xf32>
    %116 = arith.addf %115, %112 : vector<16x128xf32>
    %cst_37 = arith.constant 0.000000e+00 : f32
    %117 = vector.broadcast %cst_37 : f32 to vector<16x128xf32>
    %118 = arith.maximumf %116, %117 : vector<16x128xf32>
    %c0_38 = arith.constant 0 : index
    %c0_39 = arith.constant 0 : index
    %c0_40 = arith.constant 0 : index
    %119 = vector.load %arg7[%c0_38, %c0_39, %c0_40] : memref<1x16x128xf32, #tpu.memory_space<vmem>>, vector<1x16x128xf32>
    %120 = vector.shape_cast %119 : vector<1x16x128xf32> to vector<16x128xf32>
    %121 = vector.shape_cast %118 : vector<16x128xf32> to vector<1x16x128xf32>
    tpu.vector_store %arg7[%c0_38, %c0_39, %c0_40], %121 {strides = array<i32>} : memref<1x16x128xf32, #tpu.memory_space<vmem>>, vector<1x16x128xf32>,
    return
  }
  func.func @transform_0(%arg0: i32, %arg1: i32) -> (i32, i32, i32) {
    %c0_i32 = arith.constant 0 : i32
    %c0_i32_0 = arith.constant 0 : i32
    %c0_i32_1 = arith.constant 0 : i32
    return %arg0, %c0_i32, %c0_i32_0 : i32, i32, i32
  }
  func.func @transform_1(%arg0: i32, %arg1: i32) -> (i32, i32) {
    %c0_i32 = arith.constant 0 : i32
    %c0_i32_0 = arith.constant 0 : i32
    %c0_i32_1 = arith.constant 0 : i32
    return %c0_i32, %c0_i32_0 : i32, i32
  }
  func.func @transform_2(%arg0: i32, %arg1: i32) -> (i32, i32) {
    %c0_i32 = arith.constant 0 : i32
    %c0_i32_0 = arith.constant 0 : i32
    %c0_i32_1 = arith.constant 0 : i32
    return %c0_i32, %c0_i32_0 : i32, i32
  }
  func.func @transform_3(%arg0: i32, %arg1: i32) -> (i32, i32) {
    %c0_i32 = arith.constant 0 : i32
    %c0_i32_0 = arith.constant 0 : i32
    %c0_i32_1 = arith.constant 0 : i32
    return %c0_i32, %c0_i32_0 : i32, i32
  }
  func.func @transform_4(%arg0: i32, %arg1: i32) -> (i32, i32) {
    %c0_i32 = arith.constant 0 : i32
    %c0_i32_0 = arith.constant 0 : i32
    %c0_i32_1 = arith.constant 0 : i32
    return %c0_i32, %c0_i32_0 : i32, i32
  }
  func.func @transform_5(%arg0: i32, %arg1: i32) -> (i32, i32, i32) {
    %c0_i32 = arith.constant 0 : i32
    %c0_i32_0 = arith.constant 0 : i32
    return %arg0, %arg1, %c0_i32 : i32, i32, i32
  }
}

</mosaic_0001>

<llo_original>
// kernel: tpu_custom_call.1
$region0: #{tpu_custom_call.1}
  #allocation0 [shape = 'u32[]', space=smem, size = 0x4, offset = 0x4, fixed_abs, tag = 'smem constant byte address 0x4 - core index']
  #allocation1 [shape = 'u32[72,128]{1,0:T(1,128)}', space=vmem, size = 0x9000, scoped, tag = 'internal scratch']
  %s0 = inlined_call_operand.vmem [shape: f32[2,20,128], index: 0, kind: input, shape index: {}]
  %s1 = inlined_call_operand.hbm [shape: f32[1152,128], index: 1, kind: input, shape index: {}]
  %s2 = inlined_call_operand.vmem [shape: f32[1,128], index: 2, kind: input, shape index: {}]
  %s3 = inlined_call_operand.hbm [shape: f32[1152,128], index: 3, kind: input, shape index: {}]
  %s4 = inlined_call_operand.vmem [shape: f32[1,128], index: 4, kind: input, shape index: {}]
  %s5 = inlined_call_operand.hbm [shape: f32[2,16,128], index: 5, kind: output, shape index: {}]
  %s6 = sld [smem:[#allocation0]]
  $region61: #{tpu_custom_call.1} parent=0
    _
  %s8 = ssub.s32 1, %s6
  %s9 = scalar_select 0, %s8, %s6
  $region1: #{tpu_custom_call.1} parent=0
    #allocation2 [shape = 'u8[589824]{0}', space=vmem, size = 0x90000, scoped, tag = 'input window, operand 1, single buffered']
    #allocation3 [shape = 's32[2]{0}', space=sflag, size = 0x8, scoped, tag = 'scoped memory for tpu_custom_call.1']
    #allocation4 [shape = 's32[2]{0}', space=sflag, size = 0x8, scoped, tag = 'scoped memory for tpu_custom_call.1']
    #allocation5 [shape = 'u8[589824]{0}', space=vmem, size = 0x90000, scoped, tag = 'input window, operand 3, single buffered']
    #allocation6 [shape = 's32[1]{0}', space=sflag, size = 0x4, scoped, tag = 'scoped memory for tpu_custom_call.1']
    #allocation7 [shape = 'u8[16384]{0}', space=vmem, size = 0x4000, scoped, tag = 'output window, operand 0']
    %10 = vsyncpa [#allocation3], 0
    %11 = vsyncpa [#allocation6], 0
    %12 = vsyncpa [#allocation4], 0
    %s13 = scalar_lea.sflag [#allocation4], 1
    %14 = vsyncpa %s13, 0
    loop: start=0, step=1, limit=4
    $region2: #{tpu_custom_call.1} parent=1 // loop_pre_header
      _
    $region3: #{tpu_custom_call.1} parent=1 // loop_header
      %s16 = sphi 0, %s20
      %p17 = scmp.ge.s32.totalorder %s16, 4
      %s23 = sphi 0, %s35
      %s24 = sphi 0, %s31
      %s25 = sphi 0, %s23
      %s26 = sphi 0, %s24
      %s27 = sphi 0, %s25
      %s28 = sphi 0, %s26
      %s38 = sphi 0, %s40
      %s41 = sphi 0, %s38
      %s42 = sphi 0, %s41
      %s58 = sphi 0, %s42
      %s62 = sphi 0, %s62
      %s64 = sphi 0, %s62
      %s65 = sphi 0, %s64
      %s79 = sphi 0, %s65
      %s83 = sphi 0, %s83
      %s85 = sphi 0, %s83
      %s86 = sphi 0, %s85
      %s100 = sphi 0, %s86
      %s104 = sphi 0, %s104
      %s106 = sphi 0, %s104
      %s107 = sphi 0, %s106
      %s121 = sphi 0, %s107
      %s125 = sphi 0, %s125
      %s127 = sphi 0, %s125
      %s128 = sphi 0, %s127
      %s142 = sphi 0, %s128
      %s150 = sphi 0, %s152
      %s153 = sphi 0, %s150
      %s154 = sphi 0, %s153
      %s170 = sphi 0, %s154
    $region4: #{tpu_custom_call.1} parent=1 // loop_header_branch
      %19 = sbr.rel (%p17) target = $region8
    $region5: #{tpu_custom_call.1} parent=1 // loop_body
      %s21 = ssub.s32 %s16, 1
      %s22 = ssub.s32 %s16, 2
      %s29 = sadd.s32 1, %s24
      %p30 = scmp.ge.s32.totalorder %s29, 1
      %s31 = scalar_select %p30, 0, %s29
      %s32 = sadd.s32 1, %s23
      %s33 = scalar_select %p30, %s32, %s23
      %p34 = scmp.ge.s32.totalorder %s33, 2
      %s35 = scalar_select %p34, 0, %s33
      %s36 = ssub.s32 %s23, %s35
      %p37 = scmp.eq.s32.totalorder %s36, 0
      %s39 = sadd.s32 %s38, 1
      %s40 = scalar_select %p37, %s38, %s39
      %p43 = pneg %p37
      %p44 = scmp.eq.s32.totalorder %s16, 1
      %p45 = por %p43, %p44
      %p46 = scmp.ne.s32.totalorder %s38, %s41
      %p47 = scmp.eq.s32.totalorder %s16, 0
      %p48 = por %p46, %p47
      %p49 = scmp.ne.s32.totalorder %s38, %s41
      %p50 = scmp.eq.s32.totalorder %s21, 1
      %p51 = por %p49, %p50
      %p52 = scmp.ne.s32.totalorder %s41, %s42
      %p53 = scmp.eq.s32.totalorder %s21, 0
      %p54 = por %p52, %p53
      %p55 = scmp.ne.s32.totalorder %s41, %s42
      %p56 = scmp.eq.s32.totalorder %s22, 1
      %p57 = por %p55, %p56
      %p59 = scmp.ne.s32.totalorder %s42, %s58
      %p60 = scmp.eq.s32.totalorder %s22, 0
      %p61 = por %p59, %p60
      %s63 = sadd.s32 %s62, 1
      %p66 = scmp.eq.s32.totalorder %s16, 1
      %p67 = scmp.ne.s32.totalorder %s62, %s64
      %p68 = scmp.eq.s32.totalorder %s16, 0
      %p69 = por %p67, %p68
      %p70 = scmp.ne.s32.totalorder %s62, %s64
      %p71 = scmp.eq.s32.totalorder %s21, 1
      %p72 = por %p70, %p71
      %p73 = scmp.ne.s32.totalorder %s64, %s65
      %p74 = scmp.eq.s32.totalorder %s21, 0
      %p75 = por %p73, %p74
      %p76 = scmp.ne.s32.totalorder %s64, %s65
      %p77 = scmp.eq.s32.totalorder %s22, 1
      %p78 = por %p76, %p77
      %p80 = scmp.ne.s32.totalorder %s65, %s79
      %p81 = scmp.eq.s32.totalorder %s22, 0
      %p82 = por %p80, %p81
      %s84 = sadd.s32 %s83, 1
      %p87 = scmp.eq.s32.totalorder %s16, 1
      %p88 = scmp.ne.s32.totalorder %s83, %s85
      %p89 = scmp.eq.s32.totalorder %s16, 0
      %p90 = por %p88, %p89
      %p91 = scmp.ne.s32.totalorder %s83, %s85
      %p92 = scmp.eq.s32.totalorder %s21, 1
      %p93 = por %p91, %p92
      %p94 = scmp.ne.s32.totalorder %s85, %s86
      %p95 = scmp.eq.s32.totalorder %s21, 0
      %p96 = por %p94, %p95
      %p97 = scmp.ne.s32.totalorder %s85, %s86
      %p98 = scmp.eq.s32.totalorder %s22, 1
      %p99 = por %p97, %p98
      %p101 = scmp.ne.s32.totalorder %s86, %s100
      %p102 = scmp.eq.s32.totalorder %s22, 0
      %p103 = por %p101, %p102
      %s105 = sadd.s32 %s104, 1
      %p108 = scmp.eq.s32.totalorder %s16, 1
      %p109 = scmp.ne.s32.totalorder %s104, %s106
      %p110 = scmp.eq.s32.totalorder %s16, 0
      %p111 = por %p109, %p110
      %p112 = scmp.ne.s32.totalorder %s104, %s106
      %p113 = scmp.eq.s32.totalorder %s21, 1
      %p114 = por %p112, %p113
      %p115 = scmp.ne.s32.totalorder %s106, %s107
      %p116 = scmp.eq.s32.totalorder %s21, 0
      %p117 = por %p115, %p116
      %p118 = scmp.ne.s32.totalorder %s106, %s107
      %p119 = scmp.eq.s32.totalorder %s22, 1
      %p120 = por %p118, %p119
      %p122 = scmp.ne.s32.totalorder %s107, %s121
      %p123 = scmp.eq.s32.totalorder %s22, 0
      %p124 = por %p122, %p123
      %s126 = sadd.s32 %s125, 1
      %p129 = scmp.eq.s32.totalorder %s16, 1
      %p130 = scmp.ne.s32.totalorder %s125, %s127
      %p131 = scmp.eq.s32.totalorder %s16, 0
      %p132 = por %p130, %p131
      %p133 = scmp.ne.s32.totalorder %s125, %s127
      %p134 = scmp.eq.s32.totalorder %s21, 1
      %p135 = por %p133, %p134
      %p136 = scmp.ne.s32.totalorder %s127, %s128
      %p137 = scmp.eq.s32.totalorder %s21, 0
      %p138 = por %p136, %p137
      %p139 = scmp.ne.s32.totalorder %s127, %s128
      %p140 = scmp.eq.s32.totalorder %s22, 1
      %p141 = por %p139, %p140
      %p143 = scmp.ne.s32.totalorder %s128, %s142
      %p144 = scmp.eq.s32.totalorder %s22, 0
      %p145 = por %p143, %p144
      %s146 = ssub.s32 %s23, %s35
      %s147 = ssub.s32 %s24, %s31
      %s148 = sor.u32 %s146, %s147
      %p149 = scmp.eq.s32.totalorder %s148, 0
      %s151 = sadd.s32 %s150, 1
      %s152 = scalar_select %p149, %s150, %s151
      %p155 = pneg %p149
      %p156 = scmp.eq.s32.totalorder %s16, 1
      %p157 = por %p155, %p156
      %p158 = scmp.ne.s32.totalorder %s150, %s153
      %p159 = scmp.eq.s32.totalorder %s16, 0
      %p160 = por %p158, %p159
      %p161 = scmp.ne.s32.totalorder %s150, %s153
      %p162 = scmp.eq.s32.totalorder %s21, 1
      %p163 = por %p161, %p162
      %p164 = scmp.ne.s32.totalorder %s153, %s154
      %p165 = scmp.eq.s32.totalorder %s21, 0
      %p166 = por %p164, %p165
      %p167 = scmp.ne.s32.totalorder %s153, %s154
      %p168 = scmp.eq.s32.totalorder %s22, 1
      %p169 = por %p167, %p168
      %p171 = scmp.ne.s32.totalorder %s154, %s170
      %p172 = scmp.eq.s32.totalorder %s22, 0
      %p173 = por %p171, %p172
      %p174 = scmp.le.s32.totalorder 1, %s16
      %p175 = scmp.lt.s32.totalorder %s16, 3
      %p176 = pnand %p174, %p175
      %p177 = pneg %p176
      // Predicated region
      $region9: #{tpu_custom_call.1} parent=5 // pred_check
        _
      $region10: #{tpu_custom_call.1} parent=5 // pred_check_branch
        %179 = sbr.rel (%p176) target = $region12
      $region11: #{tpu_custom_call.1} parent=5 // pred_region
        %s180 = ssub.s32 %s16, 1
        // Predicated region
        $region13: #{tpu_custom_call.1} parent=11 // pred_check
          %p181 = pneg %p75
        $region14: #{tpu_custom_call.1} parent=11 // pred_check_branch
          %183 = sbr.rel (%p181) target = $region16
        $region15: #{tpu_custom_call.1} parent=11 // pred_region
          %185 = vsyncadd [#allocation3], 0
          %s186 = sshll.u32 %s1, 4
          %s187 = int_to_ptr.hbm [resolvable:$true] %s186
          %s188 = sshll.u32 [#allocation2], 4
          %s189 = int_to_ptr.vmem [resolvable:$true] %s188
          %194 = dma.hbm_to_vmem [thread:$0]  %s187, 18432, %s189, [#allocation3], 128, 128, 8
        $region16: #{tpu_custom_call.1} parent=11 // pred_fallthru
          _
        // Predicated region
        $region17: #{tpu_custom_call.1} parent=11 // pred_check
          %p195 = pneg %p96
        $region18: #{tpu_custom_call.1} parent=11 // pred_check_branch
          %197 = sbr.rel (%p195) target = $region20
        $region19: #{tpu_custom_call.1} parent=11 // pred_region
          _
        $region20: #{tpu_custom_call.1} parent=11 // pred_fallthru
          _
        // Predicated region
        $region21: #{tpu_custom_call.1} parent=11 // pred_check
          %p198 = pneg %p117
        $region22: #{tpu_custom_call.1} parent=11 // pred_check_branch
          %200 = sbr.rel (%p198) target = $region24
        $region23: #{tpu_custom_call.1} parent=11 // pred_region
          %202 = vsyncadd [#allocation6], 0
          %s203 = sshll.u32 %s3, 4
          %s204 = int_to_ptr.hbm [resolvable:$true] %s203
          %s205 = sshll.u32 [#allocation5], 4
          %s206 = int_to_ptr.vmem [resolvable:$true] %s205
          %211 = dma.hbm_to_vmem [thread:$0]  %s204, 18432, %s206, [#allocation6], 128, 128, 8
        $region24: #{tpu_custom_call.1} parent=11 // pred_fallthru
          _
        // Predicated region
        $region25: #{tpu_custom_call.1} parent=11 // pred_check
          %p212 = pneg %p138
        $region26: #{tpu_custom_call.1} parent=11 // pred_check_branch
          %214 = sbr.rel (%p212) target = $region28
        $region27: #{tpu_custom_call.1} parent=11 // pred_region
          _
        $region28: #{tpu_custom_call.1} parent=11 // pred_fallthru
          _
      $region12: #{tpu_custom_call.1} parent=5 // pred_fallthru
        _
      %p215 = scmp.lt.s32.totalorder %s16, 2
      // Predicated region
      $region29: #{tpu_custom_call.1} parent=5 // pred_check
        %p216 = pneg %p215
      $region30: #{tpu_custom_call.1} parent=5 // pred_check_branch
        %218 = sbr.rel (%p216) target = $region32
      $region31: #{tpu_custom_call.1} parent=5 // pred_region
        // Predicated region
        $region33: #{tpu_custom_call.1} parent=31 // pred_check
          %p219 = pneg %p48
        $region34: #{tpu_custom_call.1} parent=31 // pred_check_branch
          %221 = sbr.rel (%p219) target = $region36
        $region35: #{tpu_custom_call.1} parent=31 // pred_region
          %p222 = scmp.lt.s32.totalorder %s23, 1
          %s223 = scalar_select %p222, %s23, 1
          %s224 = smul.addr %s223, 3
          %s225 = smul.addr %s224, 8
          %s226 = scalar_lea.vmem %s0, %s225
        $region36: #{tpu_custom_call.1} parent=31 // pred_fallthru
          _
      $region32: #{tpu_custom_call.1} parent=5 // pred_fallthru
        _
      %p227 = scmp.le.s32.totalorder 1, %s16
      %p228 = scmp.lt.s32.totalorder %s16, 3
      %p229 = pnand %p227, %p228
      %p230 = pneg %p229
      // Predicated region
      $region37: #{tpu_custom_call.1} parent=5 // pred_check
        _
      $region38: #{tpu_custom_call.1} parent=5 // pred_check_branch
        %232 = sbr.rel (%p229) target = $region40
      $region39: #{tpu_custom_call.1} parent=5 // pred_region
        %s233 = ssub.s32 %s16, 1
        // Predicated region
        $region41: #{tpu_custom_call.1} parent=39 // pred_check
          %p234 = pneg %p75
        $region42: #{tpu_custom_call.1} parent=39 // pred_check_branch
          %236 = sbr.rel (%p234) target = $region44
        $region43: #{tpu_custom_call.1} parent=39 // pred_region
          %238 = dma.done [#allocation3], 18432
        $region44: #{tpu_custom_call.1} parent=39 // pred_fallthru
          _
        // Predicated region
        $region45: #{tpu_custom_call.1} parent=39 // pred_check
          %p239 = pneg %p117
        $region46: #{tpu_custom_call.1} parent=39 // pred_check_branch
          %241 = sbr.rel (%p239) target = $region48
        $region47: #{tpu_custom_call.1} parent=39 // pred_region
          %243 = dma.done [#allocation6], 18432
        $region48: #{tpu_custom_call.1} parent=39 // pred_fallthru
          _
        %p244 = scmp.lt.s32.totalorder %s25, 1
        %s245 = scalar_select %p244, %s25, 1
        %s246 = smul.addr %s245, 3
        %s247 = smul.addr %s246, 8
        %s248 = scalar_lea.vmem %s0, %s247
        %p249 = pneg %p54
        %p250 = pneg %p51
        %p251 = pneg %p75
        %p252 = pneg %p72
        %p253 = pneg %p96
        %p254 = pneg %p93
        %p255 = pneg %p117
        %p256 = pneg %p114
        %p257 = pneg %p138
        %p258 = pneg %p135
        %p259 = pneg %p166
        %p260 = pneg %p163
        %s261 = sand.u32 %s153, 1
        %s262 = scalar_lea.sflag [#allocation4], %s261
        %s263 = sand.u32 %s153, 1
        %s264 = smul.addr %s263, 16
        %s265 = scalar_lea.vmem [#allocation7], %s264
        %p266 = scmp.lt.s32.totalorder %s25, 1
        %s267 = scalar_select %p266, %s25, 1
        %s268 = smul.addr %s267, 3
        %s269 = smul.addr %s268, 8
        %s270 = scalar_lea.vmem %s0, %s269
        %s271 = smul.u32 2, %s26
        %s272 = smul.u32 %s26, 16
        %v273 = vlaneseq
        %v274 = vand.u32 %v273, 127
        %vm275 = vcmp.ge.s32.totalorder %v274, 8
        %vm276 = vcmp.lt.s32.totalorder %v274, 120
        %s277 = scalar_lea.vmem %s270, %s272
        %v278 = vld [vmem:[%s277] sm:$0xff]
        %v279 = vld [vmem:[%s277 + $0x8] sm:$0xff]
        %v280 = vld [vmem:[%s277 + $0x10] sm:$0xf]
        %281 = vrot.lane.b32.xlu0 %v278, 8
        %v282 = vpop.permute.xlu0 %281
        %283 = vrot.lane.b32.xlu0 %v279, 8
        %v284 = vpop.permute.xlu0 %283
        %285 = vrot.lane.b32.xlu0 %v280, 8
        %v286 = vpop.permute.xlu0 %285
        %v287 = vsel %vm275, 1, 0
        %vm288 = vcmp.eq.s32.totalorder %v287, 1
        %v289 = vsel %vm288, %v282, 0.0
        %v290 = vsel %vm288, %v284, 0.0
        %v291 = vsel %vm288, %v286, 0.0
        %292 = vrot.lane.b32.xlu0 %v278, 120
        %v293 = vpop.permute.xlu0 %292
        %294 = vrot.lane.b32.xlu0 %v279, 120
        %v295 = vpop.permute.xlu0 %294
        %296 = vrot.lane.b32.xlu0 %v280, 120
        %v297 = vpop.permute.xlu0 %296
        %v298 = vsel %vm276, 1, 0
        %vm299 = vcmp.eq.s32.totalorder %v298, 1
        %v300 = vsel %vm299, %v293, 0.0
        %v301 = vsel %vm299, %v295, 0.0
        %v302 = vsel %vm299, %v297, 0.0
        %vm306 = vcmask 1046528
        %v307 = vrot.slane %v278, 1
        %v308 = vrot.slane %v279, 1
        %v309 = vsel %vm306, %v307, %v308
        %v310 = vrot.slane %v280, 1
        %v311 = vsel %vm306, %v308, %v310
        %315 = vrot.lane.b32.xlu0 %v309, 8
        %v316 = vpop.permute.xlu0 %315
        %317 = vrot.lane.b32.xlu0 %v311, 8
        %v318 = vpop.permute.xlu0 %317
        %319 = vrot.lane.b32.xlu0 %v310, 8
        %v320 = vpop.permute.xlu0 %319
        %v321 = vsel %vm288, %v316, 0.0
        %v322 = vsel %vm288, %v318, 0.0
        %v323 = vsel %vm288, %v320, 0.0
        %324 = vrot.lane.b32.xlu0 %v309, 120
        %v325 = vpop.permute.xlu0 %324
        %326 = vrot.lane.b32.xlu0 %v311, 120
        %v327 = vpop.permute.xlu0 %326
        %328 = vrot.lane.b32.xlu0 %v310, 120
        %v329 = vpop.permute.xlu0 %328
        %v330 = vsel %vm299, %v325, 0.0
        %v331 = vsel %vm299, %v327, 0.0
        %v332 = vsel %vm299, %v329, 0.0
        %vm333 = vcmask 1045504
        %v334 = vrot.slane %v278, 2
        %v335 = vrot.slane %v279, 2
        %v336 = vsel %vm333, %v334, %v335
        %v337 = vrot.slane %v280, 2
        %v338 = vsel %vm333, %v335, %v337
        %342 = vrot.lane.b32.xlu0 %v336, 8
        %v343 = vpop.permute.xlu0 %342
        %344 = vrot.lane.b32.xlu0 %v338, 8
        %v345 = vpop.permute.xlu0 %344
        %346 = vrot.lane.b32.xlu0 %v337, 8
        %v347 = vpop.permute.xlu0 %346
        %v348 = vsel %vm288, %v343, 0.0
        %v349 = vsel %vm288, %v345, 0.0
        %v350 = vsel %vm288, %v347, 0.0
        %351 = vrot.lane.b32.xlu0 %v336, 120
        %v352 = vpop.permute.xlu0 %351
        %353 = vrot.lane.b32.xlu0 %v338, 120
        %v354 = vpop.permute.xlu0 %353
        %355 = vrot.lane.b32.xlu0 %v337, 120
        %v356 = vpop.permute.xlu0 %355
        %v357 = vsel %vm299, %v352, 0.0
        %v358 = vsel %vm299, %v354, 0.0
        %v359 = vsel %vm299, %v356, 0.0
        %v360 = vld [vmem:[#allocation2] sm:$0xff]
        %v361 = vld [vmem:[#allocation2 + $0x8] sm:$0xff]
        %v362 = vld [vmem:[#allocation2 + $0x10] sm:$0xff]
        %v363 = vld [vmem:[#allocation2 + $0x18] sm:$0xff]
        %v364 = vld [vmem:[#allocation2 + $0x20] sm:$0xff]
        %v365 = vld [vmem:[#allocation2 + $0x28] sm:$0xff]
        %v366 = vld [vmem:[#allocation2 + $0x30] sm:$0xff]
        %v367 = vld [vmem:[#allocation2 + $0x38] sm:$0xff]
        %v368 = vld [vmem:[#allocation2 + $0x40] sm:$0xff]
        %v369 = vld [vmem:[#allocation2 + $0x48] sm:$0xff]
        %v370 = vld [vmem:[#allocation2 + $0x50] sm:$0xff]
        %v371 = vld [vmem:[#allocation2 + $0x58] sm:$0xff]
        %v372 = vld [vmem:[#allocation2 + $0x60] sm:$0xff]
        %v373 = vld [vmem:[#allocation2 + $0x68] sm:$0xff]
        %v374 = vld [vmem:[#allocation2 + $0x70] sm:$0xff]
        %v375 = vld [vmem:[#allocation2 + $0x78] sm:$0xff]
        %v376 = vld [vmem:[#allocation2 + $0x80] sm:$0xff]
        %v377 = vld [vmem:[#allocation2 + $0x88] sm:$0xff]
        %v378 = vld [vmem:[#allocation2 + $0x90] sm:$0xff]
        %v379 = vld [vmem:[#allocation2 + $0x98] sm:$0xff]
        %v380 = vld [vmem:[#allocation2 + $0xa0] sm:$0xff]
        %v381 = vld [vmem:[#allocation2 + $0xa8] sm:$0xff]
        %v382 = vld [vmem:[#allocation2 + $0xb0] sm:$0xff]
        %v383 = vld [vmem:[#allocation2 + $0xb8] sm:$0xff]
        %v384 = vld [vmem:[#allocation2 + $0xc0] sm:$0xff]
        %v385 = vld [vmem:[#allocation2 + $0xc8] sm:$0xff]
        %v386 = vld [vmem:[#allocation2 + $0xd0] sm:$0xff]
        %v387 = vld [vmem:[#allocation2 + $0xd8] sm:$0xff]
        %v388 = vld [vmem:[#allocation2 + $0xe0] sm:$0xff]
        %v389 = vld [vmem:[#allocation2 + $0xe8] sm:$0xff]
        %v390 = vld [vmem:[#allocation2 + $0xf0] sm:$0xff]
        %v391 = vld [vmem:[#allocation2 + $0xf8] sm:$0xff]
        %v392 = vld [vmem:[#allocation2 + $0x100] sm:$0xff]
        %v393 = vld [vmem:[#allocation2 + $0x108] sm:$0xff]
        %v394 = vld [vmem:[#allocation2 + $0x110] sm:$0xff]
        %v395 = vld [vmem:[#allocation2 + $0x118] sm:$0xff]
        %v396 = vld [vmem:[#allocation2 + $0x120] sm:$0xff]
        %v397 = vld [vmem:[#allocation2 + $0x128] sm:$0xff]
        %v398 = vld [vmem:[#allocation2 + $0x130] sm:$0xff]
        %v399 = vld [vmem:[#allocation2 + $0x138] sm:$0xff]
        %v400 = vld [vmem:[#allocation2 + $0x140] sm:$0xff]
        %v401 = vld [vmem:[#allocation2 + $0x148] sm:$0xff]
        %v402 = vld [vmem:[#allocation2 + $0x150] sm:$0xff]
        %v403 = vld [vmem:[#allocation2 + $0x158] sm:$0xff]
        %v404 = vld [vmem:[#allocation2 + $0x160] sm:$0xff]
        %v405 = vld [vmem:[#allocation2 + $0x168] sm:$0xff]
        %v406 = vld [vmem:[#allocation2 + $0x170] sm:$0xff]
        %v407 = vld [vmem:[#allocation2 + $0x178] sm:$0xff]
        %v408 = vld [vmem:[#allocation2 + $0x180] sm:$0xff]
        %v409 = vld [vmem:[#allocation2 + $0x188] sm:$0xff]
        %v410 = vld [vmem:[#allocation2 + $0x190] sm:$0xff]
        %v411 = vld [vmem:[#allocation2 + $0x198] sm:$0xff]
        %v412 = vld [vmem:[#allocation2 + $0x1a0] sm:$0xff]
        %v413 = vld [vmem:[#allocation2 + $0x1a8] sm:$0xff]
        %v414 = vld [vmem:[#allocation2 + $0x1b0] sm:$0xff]
        %v415 = vld [vmem:[#allocation2 + $0x1b8] sm:$0xff]
        %v416 = vld [vmem:[#allocation2 + $0x1c0] sm:$0xff]
        %v417 = vld [vmem:[#allocation2 + $0x1c8] sm:$0xff]
        %v418 = vld [vmem:[#allocation2 + $0x1d0] sm:$0xff]
        %v419 = vld [vmem:[#allocation2 + $0x1d8] sm:$0xff]
        %v420 = vld [vmem:[#allocation2 + $0x1e0] sm:$0xff]
        %v421 = vld [vmem:[#allocation2 + $0x1e8] sm:$0xff]
        %v422 = vld [vmem:[#allocation2 + $0x1f0] sm:$0xff]
        %v423 = vld [vmem:[#allocation2 + $0x1f8] sm:$0xff]
        %v424 = vld [vmem:[#allocation2 + $0x200] sm:$0xff]
        %v425 = vld [vmem:[#allocation2 + $0x208] sm:$0xff]
        %v426 = vld [vmem:[#allocation2 + $0x210] sm:$0xff]
        %v427 = vld [vmem:[#allocation2 + $0x218] sm:$0xff]
        %v428 = vld [vmem:[#allocation2 + $0x220] sm:$0xff]
        %v429 = vld [vmem:[#allocation2 + $0x228] sm:$0xff]
        %v430 = vld [vmem:[#allocation2 + $0x230] sm:$0xff]
        %v431 = vld [vmem:[#allocation2 + $0x238] sm:$0xff]
        %v432 = vld [vmem:[#allocation2 + $0x240] sm:$0xff]
        %v433 = vld [vmem:[#allocation2 + $0x248] sm:$0xff]
        %v434 = vld [vmem:[#allocation2 + $0x250] sm:$0xff]
        %v435 = vld [vmem:[#allocation2 + $0x258] sm:$0xff]
        %v436 = vld [vmem:[#allocation2 + $0x260] sm:$0xff]
        %v437 = vld [vmem:[#allocation2 + $0x268] sm:$0xff]
        %v438 = vld [vmem:[#allocation2 + $0x270] sm:$0xff]
        %v439 = vld [vmem:[#allocation2 + $0x278] sm:$0xff]
        %v440 = vld [vmem:[#allocation2 + $0x280] sm:$0xff]
        %v441 = vld [vmem:[#allocation2 + $0x288] sm:$0xff]
        %v442 = vld [vmem:[#allocation2 + $0x290] sm:$0xff]
        %v443 = vld [vmem:[#allocation2 + $0x298] sm:$0xff]
        %v444 = vld [vmem:[#allocation2 + $0x2a0] sm:$0xff]
        %v445 = vld [vmem:[#allocation2 + $0x2a8] sm:$0xff]
        %v446 = vld [vmem:[#allocation2 + $0x2b0] sm:$0xff]
        %v447 = vld [vmem:[#allocation2 + $0x2b8] sm:$0xff]
        %v448 = vld [vmem:[#allocation2 + $0x2c0] sm:$0xff]
        %v449 = vld [vmem:[#allocation2 + $0x2c8] sm:$0xff]
        %v450 = vld [vmem:[#allocation2 + $0x2d0] sm:$0xff]
        %v451 = vld [vmem:[#allocation2 + $0x2d8] sm:$0xff]
        %v452 = vld [vmem:[#allocation2 + $0x2e0] sm:$0xff]
        %v453 = vld [vmem:[#allocation2 + $0x2e8] sm:$0xff]
        %v454 = vld [vmem:[#allocation2 + $0x2f0] sm:$0xff]
        %v455 = vld [vmem:[#allocation2 + $0x2f8] sm:$0xff]
        %v456 = vld [vmem:[#allocation2 + $0x300] sm:$0xff]
        %v457 = vld [vmem:[#allocation2 + $0x308] sm:$0xff]
        %v458 = vld [vmem:[#allocation2 + $0x310] sm:$0xff]
        %v459 = vld [vmem:[#allocation2 + $0x318] sm:$0xff]
        %v460 = vld [vmem:[#allocation2 + $0x320] sm:$0xff]
        %v461 = vld [vmem:[#allocation2 + $0x328] sm:$0xff]
        %v462 = vld [vmem:[#allocation2 + $0x330] sm:$0xff]
        %v463 = vld [vmem:[#allocation2 + $0x338] sm:$0xff]
        %v464 = vld [vmem:[#allocation2 + $0x340] sm:$0xff]
        %v465 = vld [vmem:[#allocation2 + $0x348] sm:$0xff]
        %v466 = vld [vmem:[#allocation2 + $0x350] sm:$0xff]
        %v467 = vld [vmem:[#allocation2 + $0x358] sm:$0xff]
        %v468 = vld [vmem:[#allocation2 + $0x360] sm:$0xff]
        %v469 = vld [vmem:[#allocation2 + $0x368] sm:$0xff]
        %v470 = vld [vmem:[#allocation2 + $0x370] sm:$0xff]
        %v471 = vld [vmem:[#allocation2 + $0x378] sm:$0xff]
        %v472 = vld [vmem:[#allocation2 + $0x380] sm:$0xff]
        %v473 = vld [vmem:[#allocation2 + $0x388] sm:$0xff]
        %v474 = vld [vmem:[#allocation2 + $0x390] sm:$0xff]
        %v475 = vld [vmem:[#allocation2 + $0x398] sm:$0xff]
        %v476 = vld [vmem:[#allocation2 + $0x3a0] sm:$0xff]
        %v477 = vld [vmem:[#allocation2 + $0x3a8] sm:$0xff]
        %v478 = vld [vmem:[#allocation2 + $0x3b0] sm:$0xff]
        %v479 = vld [vmem:[#allocation2 + $0x3b8] sm:$0xff]
        %v480 = vld [vmem:[#allocation2 + $0x3c0] sm:$0xff]
        %v481 = vld [vmem:[#allocation2 + $0x3c8] sm:$0xff]
        %v482 = vld [vmem:[#allocation2 + $0x3d0] sm:$0xff]
        %v483 = vld [vmem:[#allocation2 + $0x3d8] sm:$0xff]
        %v484 = vld [vmem:[#allocation2 + $0x3e0] sm:$0xff]
        %v485 = vld [vmem:[#allocation2 + $0x3e8] sm:$0xff]
        %v486 = vld [vmem:[#allocation2 + $0x3f0] sm:$0xff]
        %v487 = vld [vmem:[#allocation2 + $0x3f8] sm:$0xff]
        %v488 = vld [vmem:[#allocation2 + $0x400] sm:$0xff]
        %v489 = vld [vmem:[#allocation2 + $0x408] sm:$0xff]
        %v490 = vld [vmem:[#allocation2 + $0x410] sm:$0xff]
        %v491 = vld [vmem:[#allocation2 + $0x418] sm:$0xff]
        %v492 = vld [vmem:[#allocation2 + $0x420] sm:$0xff]
        %v493 = vld [vmem:[#allocation2 + $0x428] sm:$0xff]
        %v494 = vld [vmem:[#allocation2 + $0x430] sm:$0xff]
        %v495 = vld [vmem:[#allocation2 + $0x438] sm:$0xff]
        %v496 = vld [vmem:[#allocation2 + $0x440] sm:$0xff]
        %v497 = vld [vmem:[#allocation2 + $0x448] sm:$0xff]
        %v498 = vld [vmem:[#allocation2 + $0x450] sm:$0xff]
        %v499 = vld [vmem:[#allocation2 + $0x458] sm:$0xff]
        %v500 = vld [vmem:[#allocation2 + $0x460] sm:$0xff]
        %v501 = vld [vmem:[#allocation2 + $0x468] sm:$0xff]
        %v502 = vld [vmem:[#allocation2 + $0x470] sm:$0xff]
        %v503 = vld [vmem:[#allocation2 + $0x478] sm:$0xff]
        %v504 = vld [vmem:[%s2] sm:$0x1]
        %v506 = vperm.slane %v504, 0
        %508 = vmatpush.msra.mxu0 %v375
        %509 = vmatpush.msra.mxu0 %v374
        %510 = vmatpush.msra.mxu0 %v373
        %511 = vmatpush.msra.mxu0 %v372
        %512 = vmatpush.msra.mxu0 %v371
        %513 = vmatpush.msra.mxu0 %v370
        %514 = vmatpush.msra.mxu0 %v369
        %515 = vmatpush.msra.mxu0 %v368
        %516 = vmatpush.msra.mxu0 %v367
        %517 = vmatpush.msra.mxu0 %v366
        %518 = vmatpush.msra.mxu0 %v365
        %519 = vmatpush.msra.mxu0 %v364
        %520 = vmatpush.msra.mxu0 %v363
        %521 = vmatpush.msra.mxu0 %v362
        %522 = vmatpush.msra.mxu0 %v361
        %523 = vmatpush.msra.mxu0 %v360
        %524 = vmatmul.f32.gmra.mxu0 %v289
        %v525 = vpop.f32.mrf.mxu0
        %v526 = vadd.f32 %v506, %v525
        %527 = vmatmul.f32.gmra.mxu0 %v290
        %v528 = vpop.f32.mrf.mxu0
        %v529 = vadd.f32 %v506, %v528
        %530 = vmatmul.f32.gmra.mxu0 %v291
        %v531 = vpop.f32.mrf.mxu0
        %v532 = vadd.f32 %v506, %v531
        %533 = vdwg.mxu0
        %534 = vmatpush.msra.mxu0 %v391
        %535 = vmatpush.msra.mxu0 %v390
        %536 = vmatpush.msra.mxu0 %v389
        %537 = vmatpush.msra.mxu0 %v388
        %538 = vmatpush.msra.mxu0 %v387
        %539 = vmatpush.msra.mxu0 %v386
        %540 = vmatpush.msra.mxu0 %v385
        %541 = vmatpush.msra.mxu0 %v384
        %542 = vmatpush.msra.mxu0 %v383
        %543 = vmatpush.msra.mxu0 %v382
        %544 = vmatpush.msra.mxu0 %v381
        %545 = vmatpush.msra.mxu0 %v380
        %546 = vmatpush.msra.mxu0 %v379
        %547 = vmatpush.msra.mxu0 %v378
        %548 = vmatpush.msra.mxu0 %v377
        %549 = vmatpush.msra.mxu0 %v376
        %550 = vmatmul.f32.gmra.mxu0 %v278
        %v551 = vpop.f32.mrf.mxu0
        %v552 = vadd.f32 %v526, %v551
        %553 = vmatmul.f32.gmra.mxu0 %v279
        %v554 = vpop.f32.mrf.mxu0
        %v555 = vadd.f32 %v529, %v554
        %556 = vmatmul.f32.gmra.mxu0 %v280
        %v557 = vpop.f32.mrf.mxu0
        %v558 = vadd.f32 %v532, %v557
        %559 = vdwg.mxu0
        %560 = vmatpush.msra.mxu0 %v407
        %561 = vmatpush.msra.mxu0 %v406
        %562 = vmatpush.msra.mxu0 %v405
        %563 = vmatpush.msra.mxu0 %v404
        %564 = vmatpush.msra.mxu0 %v403
        %565 = vmatpush.msra.mxu0 %v402
        %566 = vmatpush.msra.mxu0 %v401
        %567 = vmatpush.msra.mxu0 %v400
        %568 = vmatpush.msra.mxu0 %v399
        %569 = vmatpush.msra.mxu0 %v398
        %570 = vmatpush.msra.mxu0 %v397
        %571 = vmatpush.msra.mxu0 %v396
        %572 = vmatpush.msra.mxu0 %v395
        %573 = vmatpush.msra.mxu0 %v394
        %574 = vmatpush.msra.mxu0 %v393
        %575 = vmatpush.msra.mxu0 %v392
        %576 = vmatmul.f32.gmra.mxu0 %v300
        %v577 = vpop.f32.mrf.mxu0
        %v578 = vadd.f32 %v552, %v577
        %579 = vmatmul.f32.gmra.mxu0 %v301
        %v580 = vpop.f32.mrf.mxu0
        %v581 = vadd.f32 %v555, %v580
        %582 = vmatmul.f32.gmra.mxu0 %v302
        %v583 = vpop.f32.mrf.mxu0
        %v584 = vadd.f32 %v558, %v583
        %585 = vdwg.mxu0
        %586 = vmatpush.msra.mxu0 %v423
        %587 = vmatpush.msra.mxu0 %v422
        %588 = vmatpush.msra.mxu0 %v421
        %589 = vmatpush.msra.mxu0 %v420
        %590 = vmatpush.msra.mxu0 %v419
        %591 = vmatpush.msra.mxu0 %v418
        %592 = vmatpush.msra.mxu0 %v417
        %593 = vmatpush.msra.mxu0 %v416
        %594 = vmatpush.msra.mxu0 %v415
        %595 = vmatpush.msra.mxu0 %v414
        %596 = vmatpush.msra.mxu0 %v413
        %597 = vmatpush.msra.mxu0 %v412
        %598 = vmatpush.msra.mxu0 %v411
        %599 = vmatpush.msra.mxu0 %v410
        %600 = vmatpush.msra.mxu0 %v409
        %601 = vmatpush.msra.mxu0 %v408
        %602 = vmatmul.f32.gmra.mxu0 %v321
        %v603 = vpop.f32.mrf.mxu0
        %v604 = vadd.f32 %v578, %v603
        %605 = vmatmul.f32.gmra.mxu0 %v322
        %v606 = vpop.f32.mrf.mxu0
        %v607 = vadd.f32 %v581, %v606
        %608 = vmatmul.f32.gmra.mxu0 %v323
        %v609 = vpop.f32.mrf.mxu0
        %v610 = vadd.f32 %v584, %v609
        %611 = vdwg.mxu0
        %612 = vmatpush.msra.mxu0 %v439
        %613 = vmatpush.msra.mxu0 %v438
        %614 = vmatpush.msra.mxu0 %v437
        %615 = vmatpush.msra.mxu0 %v436
        %616 = vmatpush.msra.mxu0 %v435
        %617 = vmatpush.msra.mxu0 %v434
        %618 = vmatpush.msra.mxu0 %v433
        %619 = vmatpush.msra.mxu0 %v432
        %620 = vmatpush.msra.mxu0 %v431
        %621 = vmatpush.msra.mxu0 %v430
        %622 = vmatpush.msra.mxu0 %v429
        %623 = vmatpush.msra.mxu0 %v428
        %624 = vmatpush.msra.mxu0 %v427
        %625 = vmatpush.msra.mxu0 %v426
        %626 = vmatpush.msra.mxu0 %v425
        %627 = vmatpush.msra.mxu0 %v424
        %628 = vmatmul.f32.gmra.mxu0 %v309
        %v629 = vpop.f32.mrf.mxu0
        %v630 = vadd.f32 %v604, %v629
        %631 = vmatmul.f32.gmra.mxu0 %v311
        %v632 = vpop.f32.mrf.mxu0
        %v633 = vadd.f32 %v607, %v632
        %634 = vmatmul.f32.gmra.mxu0 %v310
        %v635 = vpop.f32.mrf.mxu0
        %v636 = vadd.f32 %v610, %v635
        %637 = vdwg.mxu0
        %638 = vmatpush.msra.mxu0 %v455
        %639 = vmatpush.msra.mxu0 %v454
        %640 = vmatpush.msra.mxu0 %v453
        %641 = vmatpush.msra.mxu0 %v452
        %642 = vmatpush.msra.mxu0 %v451
        %643 = vmatpush.msra.mxu0 %v450
        %644 = vmatpush.msra.mxu0 %v449
        %645 = vmatpush.msra.mxu0 %v448
        %646 = vmatpush.msra.mxu0 %v447
        %647 = vmatpush.msra.mxu0 %v446
        %648 = vmatpush.msra.mxu0 %v445
        %649 = vmatpush.msra.mxu0 %v444
        %650 = vmatpush.msra.mxu0 %v443
        %651 = vmatpush.msra.mxu0 %v442
        %652 = vmatpush.msra.mxu0 %v441
        %653 = vmatpush.msra.mxu0 %v440
        %654 = vmatmul.f32.gmra.mxu0 %v330
        %v655 = vpop.f32.mrf.mxu0
        %v656 = vadd.f32 %v630, %v655
        %657 = vmatmul.f32.gmra.mxu0 %v331
        %v658 = vpop.f32.mrf.mxu0
        %v659 = vadd.f32 %v633, %v658
        %660 = vmatmul.f32.gmra.mxu0 %v332
        %v661 = vpop.f32.mrf.mxu0
        %v662 = vadd.f32 %v636, %v661
        %663 = vdwg.mxu0
        %664 = vmatpush.msra.mxu0 %v471
        %665 = vmatpush.msra.mxu0 %v470
        %666 = vmatpush.msra.mxu0 %v469
        %667 = vmatpush.msra.mxu0 %v468
        %668 = vmatpush.msra.mxu0 %v467
        %669 = vmatpush.msra.mxu0 %v466
        %670 = vmatpush.msra.mxu0 %v465
        %671 = vmatpush.msra.mxu0 %v464
        %672 = vmatpush.msra.mxu0 %v463
        %673 = vmatpush.msra.mxu0 %v462
        %674 = vmatpush.msra.mxu0 %v461
        %675 = vmatpush.msra.mxu0 %v460
        %676 = vmatpush.msra.mxu0 %v459
        %677 = vmatpush.msra.mxu0 %v458
        %678 = vmatpush.msra.mxu0 %v457
        %679 = vmatpush.msra.mxu0 %v456
        %680 = vmatmul.f32.gmra.mxu0 %v348
        %v681 = vpop.f32.mrf.mxu0
        %v682 = vadd.f32 %v656, %v681
        %683 = vmatmul.f32.gmra.mxu0 %v349
        %v684 = vpop.f32.mrf.mxu0
        %v685 = vadd.f32 %v659, %v684
        %686 = vmatmul.f32.gmra.mxu0 %v350
        %v687 = vpop.f32.mrf.mxu0
        %v688 = vadd.f32 %v662, %v687
        %689 = vdwg.mxu0
        %690 = vmatpush.msra.mxu0 %v487
        %691 = vmatpush.msra.mxu0 %v486
        %692 = vmatpush.msra.mxu0 %v485
        %693 = vmatpush.msra.mxu0 %v484
        %694 = vmatpush.msra.mxu0 %v483
        %695 = vmatpush.msra.mxu0 %v482
        %696 = vmatpush.msra.mxu0 %v481
        %697 = vmatpush.msra.mxu0 %v480
        %698 = vmatpush.msra.mxu0 %v479
        %699 = vmatpush.msra.mxu0 %v478
        %700 = vmatpush.msra.mxu0 %v477
        %701 = vmatpush.msra.mxu0 %v476
        %702 = vmatpush.msra.mxu0 %v475
        %703 = vmatpush.msra.mxu0 %v474
        %704 = vmatpush.msra.mxu0 %v473
        %705 = vmatpush.msra.mxu0 %v472
        %706 = vmatmul.f32.gmra.mxu0 %v336
        %v707 = vpop.f32.mrf.mxu0
        %v708 = vadd.f32 %v682, %v707
        %709 = vmatmul.f32.gmra.mxu0 %v338
        %v710 = vpop.f32.mrf.mxu0
        %v711 = vadd.f32 %v685, %v710
        %712 = vmatmul.f32.gmra.mxu0 %v337
        %v713 = vpop.f32.mrf.mxu0
        %v714 = vadd.f32 %v688, %v713
        %715 = vdwg.mxu0
        %716 = vmatpush.msra.mxu0 %v503
        %717 = vmatpush.msra.mxu0 %v502
        %718 = vmatpush.msra.mxu0 %v501
        %719 = vmatpush.msra.mxu0 %v500
        %720 = vmatpush.msra.mxu0 %v499
        %721 = vmatpush.msra.mxu0 %v498
        %722 = vmatpush.msra.mxu0 %v497
        %723 = vmatpush.msra.mxu0 %v496
        %724 = vmatpush.msra.mxu0 %v495
        %725 = vmatpush.msra.mxu0 %v494
        %726 = vmatpush.msra.mxu0 %v493
        %727 = vmatpush.msra.mxu0 %v492
        %728 = vmatpush.msra.mxu0 %v491
        %729 = vmatpush.msra.mxu0 %v490
        %730 = vmatpush.msra.mxu0 %v489
        %731 = vmatpush.msra.mxu0 %v488
        %732 = vmatmul.f32.gmra.mxu0 %v357
        %v733 = vpop.f32.mrf.mxu0
        %v734 = vadd.f32 %v708, %v733
        %735 = vmatmul.f32.gmra.mxu0 %v358
        %v736 = vpop.f32.mrf.mxu0
        %v737 = vadd.f32 %v711, %v736
        %738 = vmatmul.f32.gmra.mxu0 %v359
        %v739 = vpop.f32.mrf.mxu0
        %v740 = vadd.f32 %v714, %v739
        %741 = vdwg.mxu0
        %v742 = vmax.f32 %v734, 0.0
        %v743 = vmax.f32 %v737, 0.0
        %v744 = vmax.f32 %v740, 0.0
        %s745 = ssub.s32 %s272, 1
        %v746 = vlaneseq
        %v747 = vshrl.u32 %v746, 7
        %v748 = vadd.s32 %v747, 8
        %v749 = vadd.s32 %v747, 16
        %v750 = vstv %s745
        %v751 = vadd.s32 %v750, %v747
        %v752 = vadd.s32 %v750, %v748
        %v753 = vadd.s32 %v750, %v749
        %vm754 = vcmp.ge.s32.totalorder %v751, 0
        %vm755 = vcmp.ge.s32.totalorder %v752, 0
        %vm756 = vcmp.ge.s32.totalorder %v753, 0
        %vm757 = vcmp.lt.s32.totalorder %v751, 16
        %vm758 = vcmp.lt.s32.totalorder %v752, 16
        %vm759 = vcmp.lt.s32.totalorder %v753, 16
        %vm760 = vmand %vm754, %vm757
        %vm761 = vmand %vm755, %vm758
        %vm762 = vmand %vm756, %vm759
        %v763 = vsel %vm760, 1, 0
        %v764 = vsel %vm761, 1, 0
        %v765 = vsel %vm762, 1, 0
        %vm766 = vcmp.eq.s32.totalorder %v763, 1
        %vm767 = vcmp.eq.s32.totalorder %v764, 1
        %vm768 = vcmp.eq.s32.totalorder %v765, 1
        %v769 = vsel %vm766, %v742, 0.0
        %v770 = vsel %vm767, %v743, 0.0
        %v771 = vsel %vm768, %v744, 0.0
        %772 = vrot.lane.b32.xlu0 %v769, 8
        %v773 = vpop.permute.xlu0 %772
        %774 = vrot.lane.b32.xlu0 %v770, 8
        %v775 = vpop.permute.xlu0 %774
        %v776 = vsel %vm288, %v773, 0.0
        %v777 = vsel %vm288, %v775, 0.0
        %778 = vrot.lane.b32.xlu0 %v769, 120
        %v779 = vpop.permute.xlu0 %778
        %780 = vrot.lane.b32.xlu0 %v770, 120
        %v781 = vpop.permute.xlu0 %780
        %v782 = vsel %vm299, %v779, 0.0
        %v783 = vsel %vm299, %v781, 0.0
        %v787 = vrot.slane %v769, 1
        %v788 = vrot.slane %v770, 1
        %v789 = vsel %vm306, %v787, %v788
        %v790 = vrot.slane %v771, 1
        %v791 = vsel %vm306, %v788, %v790
        %794 = vrot.lane.b32.xlu0 %v789, 8
        %v795 = vpop.permute.xlu0 %794
        %796 = vrot.lane.b32.xlu0 %v791, 8
        %v797 = vpop.permute.xlu0 %796
        %v798 = vsel %vm288, %v795, 0.0
        %v799 = vsel %vm288, %v797, 0.0
        %800 = vrot.lane.b32.xlu0 %v789, 120
        %v801 = vpop.permute.xlu0 %800
        %802 = vrot.lane.b32.xlu0 %v791, 120
        %v803 = vpop.permute.xlu0 %802
        %v804 = vsel %vm299, %v801, 0.0
        %v805 = vsel %vm299, %v803, 0.0
        %v806 = vrot.slane %v769, 2
        %v807 = vrot.slane %v770, 2
        %v808 = vsel %vm333, %v806, %v807
        %v809 = vrot.slane %v771, 2
        %v810 = vsel %vm333, %v807, %v809
        %813 = vrot.lane.b32.xlu0 %v808, 8
        %v814 = vpop.permute.xlu0 %813
        %815 = vrot.lane.b32.xlu0 %v810, 8
        %v816 = vpop.permute.xlu0 %815
        %v817 = vsel %vm288, %v814, 0.0
        %v818 = vsel %vm288, %v816, 0.0
        %819 = vrot.lane.b32.xlu0 %v808, 120
        %v820 = vpop.permute.xlu0 %819
        %821 = vrot.lane.b32.xlu0 %v810, 120
        %v822 = vpop.permute.xlu0 %821
        %v823 = vsel %vm299, %v820, 0.0
        %v824 = vsel %vm299, %v822, 0.0
        %v825 = vld [vmem:[#allocation5] sm:$0xff]
        %v826 = vld [vmem:[#allocation5 + $0x8] sm:$0xff]
        %v827 = vld [vmem:[#allocation5 + $0x10] sm:$0xff]
        %v828 = vld [vmem:[#allocation5 + $0x18] sm:$0xff]
        %v829 = vld [vmem:[#allocation5 + $0x20] sm:$0xff]
        %v830 = vld [vmem:[#allocation5 + $0x28] sm:$0xff]
        %v831 = vld [vmem:[#allocation5 + $0x30] sm:$0xff]
        %v832 = vld [vmem:[#allocation5 + $0x38] sm:$0xff]
        %v833 = vld [vmem:[#allocation5 + $0x40] sm:$0xff]
        %v834 = vld [vmem:[#allocation5 + $0x48] sm:$0xff]
        %v835 = vld [vmem:[#allocation5 + $0x50] sm:$0xff]
        %v836 = vld [vmem:[#allocation5 + $0x58] sm:$0xff]
        %v837 = vld [vmem:[#allocation5 + $0x60] sm:$0xff]
        %v838 = vld [vmem:[#allocation5 + $0x68] sm:$0xff]
        %v839 = vld [vmem:[#allocation5 + $0x70] sm:$0xff]
        %v840 = vld [vmem:[#allocation5 + $0x78] sm:$0xff]
        %v841 = vld [vmem:[#allocation5 + $0x80] sm:$0xff]
        %v842 = vld [vmem:[#allocation5 + $0x88] sm:$0xff]
        %v843 = vld [vmem:[#allocation5 + $0x90] sm:$0xff]
        %v844 = vld [vmem:[#allocation5 + $0x98] sm:$0xff]
        %v845 = vld [vmem:[#allocation5 + $0xa0] sm:$0xff]
        %v846 = vld [vmem:[#allocation5 + $0xa8] sm:$0xff]
        %v847 = vld [vmem:[#allocation5 + $0xb0] sm:$0xff]
        %v848 = vld [vmem:[#allocation5 + $0xb8] sm:$0xff]
        %v849 = vld [vmem:[#allocation5 + $0xc0] sm:$0xff]
        %v850 = vld [vmem:[#allocation5 + $0xc8] sm:$0xff]
        %v851 = vld [vmem:[#allocation5 + $0xd0] sm:$0xff]
        %v852 = vld [vmem:[#allocation5 + $0xd8] sm:$0xff]
        %v853 = vld [vmem:[#allocation5 + $0xe0] sm:$0xff]
        %v854 = vld [vmem:[#allocation5 + $0xe8] sm:$0xff]
        %v855 = vld [vmem:[#allocation5 + $0xf0] sm:$0xff]
        %v856 = vld [vmem:[#allocation5 + $0xf8] sm:$0xff]
        %v857 = vld [vmem:[#allocation5 + $0x100] sm:$0xff]
        %v858 = vld [vmem:[#allocation5 + $0x108] sm:$0xff]
        %v859 = vld [vmem:[#allocation5 + $0x110] sm:$0xff]
        %v860 = vld [vmem:[#allocation5 + $0x118] sm:$0xff]
        %v861 = vld [vmem:[#allocation5 + $0x120] sm:$0xff]
        %v862 = vld [vmem:[#allocation5 + $0x128] sm:$0xff]
        %v863 = vld [vmem:[#allocation5 + $0x130] sm:$0xff]
        %v864 = vld [vmem:[#allocation5 + $0x138] sm:$0xff]
        %v865 = vld [vmem:[#allocation5 + $0x140] sm:$0xff]
        %v866 = vld [vmem:[#allocation5 + $0x148] sm:$0xff]
        %v867 = vld [vmem:[#allocation5 + $0x150] sm:$0xff]
        %v868 = vld [vmem:[#allocation5 + $0x158] sm:$0xff]
        %v869 = vld [vmem:[#allocation5 + $0x160] sm:$0xff]
        %v870 = vld [vmem:[#allocation5 + $0x168] sm:$0xff]
        %v871 = vld [vmem:[#allocation5 + $0x170] sm:$0xff]
        %v872 = vld [vmem:[#allocation5 + $0x178] sm:$0xff]
        %v873 = vld [vmem:[#allocation5 + $0x180] sm:$0xff]
        %v874 = vld [vmem:[#allocation5 + $0x188] sm:$0xff]
        %v875 = vld [vmem:[#allocation5 + $0x190] sm:$0xff]
        %v876 = vld [vmem:[#allocation5 + $0x198] sm:$0xff]
        %v877 = vld [vmem:[#allocation5 + $0x1a0] sm:$0xff]
        %v878 = vld [vmem:[#allocation5 + $0x1a8] sm:$0xff]
        %v879 = vld [vmem:[#allocation5 + $0x1b0] sm:$0xff]
        %v880 = vld [vmem:[#allocation5 + $0x1b8] sm:$0xff]
        %v881 = vld [vmem:[#allocation5 + $0x1c0] sm:$0xff]
        %v882 = vld [vmem:[#allocation5 + $0x1c8] sm:$0xff]
        %v883 = vld [vmem:[#allocation5 + $0x1d0] sm:$0xff]
        %v884 = vld [vmem:[#allocation5 + $0x1d8] sm:$0xff]
        %v885 = vld [vmem:[#allocation5 + $0x1e0] sm:$0xff]
        %v886 = vld [vmem:[#allocation5 + $0x1e8] sm:$0xff]
        %v887 = vld [vmem:[#allocation5 + $0x1f0] sm:$0xff]
        %v888 = vld [vmem:[#allocation5 + $0x1f8] sm:$0xff]
        %v889 = vld [vmem:[#allocation5 + $0x200] sm:$0xff]
        %v890 = vld [vmem:[#allocation5 + $0x208] sm:$0xff]
        %v891 = vld [vmem:[#allocation5 + $0x210] sm:$0xff]
        %v892 = vld [vmem:[#allocation5 + $0x218] sm:$0xff]
        %v893 = vld [vmem:[#allocation5 + $0x220] sm:$0xff]
        %v894 = vld [vmem:[#allocation5 + $0x228] sm:$0xff]
        %v895 = vld [vmem:[#allocation5 + $0x230] sm:$0xff]
        %v896 = vld [vmem:[#allocation5 + $0x238] sm:$0xff]
        %v897 = vld [vmem:[#allocation5 + $0x240] sm:$0xff]
        %v898 = vld [vmem:[#allocation5 + $0x248] sm:$0xff]
        %v899 = vld [vmem:[#allocation5 + $0x250] sm:$0xff]
        %v900 = vld [vmem:[#allocation5 + $0x258] sm:$0xff]
        %v901 = vld [vmem:[#allocation5 + $0x260] sm:$0xff]
        %v902 = vld [vmem:[#allocation5 + $0x268] sm:$0xff]
        %v903 = vld [vmem:[#allocation5 + $0x270] sm:$0xff]
        %v904 = vld [vmem:[#allocation5 + $0x278] sm:$0xff]
        %v905 = vld [vmem:[#allocation5 + $0x280] sm:$0xff]
        %v906 = vld [vmem:[#allocation5 + $0x288] sm:$0xff]
        %v907 = vld [vmem:[#allocation5 + $0x290] sm:$0xff]
        %v908 = vld [vmem:[#allocation5 + $0x298] sm:$0xff]
        %v909 = vld [vmem:[#allocation5 + $0x2a0] sm:$0xff]
        %v910 = vld [vmem:[#allocation5 + $0x2a8] sm:$0xff]
        %v911 = vld [vmem:[#allocation5 + $0x2b0] sm:$0xff]
        %v912 = vld [vmem:[#allocation5 + $0x2b8] sm:$0xff]
        %v913 = vld [vmem:[#allocation5 + $0x2c0] sm:$0xff]
        %v914 = vld [vmem:[#allocation5 + $0x2c8] sm:$0xff]
        %v915 = vld [vmem:[#allocation5 + $0x2d0] sm:$0xff]
        %v916 = vld [vmem:[#allocation5 + $0x2d8] sm:$0xff]
        %v917 = vld [vmem:[#allocation5 + $0x2e0] sm:$0xff]
        %v918 = vld [vmem:[#allocation5 + $0x2e8] sm:$0xff]
        %v919 = vld [vmem:[#allocation5 + $0x2f0] sm:$0xff]
        %v920 = vld [vmem:[#allocation5 + $0x2f8] sm:$0xff]
        %v921 = vld [vmem:[#allocation5 + $0x300] sm:$0xff]
        %v922 = vld [vmem:[#allocation5 + $0x308] sm:$0xff]
        %v923 = vld [vmem:[#allocation5 + $0x310] sm:$0xff]
        %v924 = vld [vmem:[#allocation5 + $0x318] sm:$0xff]
        %v925 = vld [vmem:[#allocation5 + $0x320] sm:$0xff]
        %v926 = vld [vmem:[#allocation5 + $0x328] sm:$0xff]
        %v927 = vld [vmem:[#allocation5 + $0x330] sm:$0xff]
        %v928 = vld [vmem:[#allocation5 + $0x338] sm:$0xff]
        %v929 = vld [vmem:[#allocation5 + $0x340] sm:$0xff]
        %v930 = vld [vmem:[#allocation5 + $0x348] sm:$0xff]
        %v931 = vld [vmem:[#allocation5 + $0x350] sm:$0xff]
        %v932 = vld [vmem:[#allocation5 + $0x358] sm:$0xff]
        %v933 = vld [vmem:[#allocation5 + $0x360] sm:$0xff]
        %v934 = vld [vmem:[#allocation5 + $0x368] sm:$0xff]
        %v935 = vld [vmem:[#allocation5 + $0x370] sm:$0xff]
        %v936 = vld [vmem:[#allocation5 + $0x378] sm:$0xff]
        %v937 = vld [vmem:[#allocation5 + $0x380] sm:$0xff]
        %v938 = vld [vmem:[#allocation5 + $0x388] sm:$0xff]
        %v939 = vld [vmem:[#allocation5 + $0x390] sm:$0xff]
        %v940 = vld [vmem:[#allocation5 + $0x398] sm:$0xff]
        %v941 = vld [vmem:[#allocation5 + $0x3a0] sm:$0xff]
        %v942 = vld [vmem:[#allocation5 + $0x3a8] sm:$0xff]
        %v943 = vld [vmem:[#allocation5 + $0x3b0] sm:$0xff]
        %v944 = vld [vmem:[#allocation5 + $0x3b8] sm:$0xff]
        %v945 = vld [vmem:[#allocation5 + $0x3c0] sm:$0xff]
        %v946 = vld [vmem:[#allocation5 + $0x3c8] sm:$0xff]
        %v947 = vld [vmem:[#allocation5 + $0x3d0] sm:$0xff]
        %v948 = vld [vmem:[#allocation5 + $0x3d8] sm:$0xff]
        %v949 = vld [vmem:[#allocation5 + $0x3e0] sm:$0xff]
        %v950 = vld [vmem:[#allocation5 + $0x3e8] sm:$0xff]
        %v951 = vld [vmem:[#allocation5 + $0x3f0] sm:$0xff]
        %v952 = vld [vmem:[#allocation5 + $0x3f8] sm:$0xff]
        %v953 = vld [vmem:[#allocation5 + $0x400] sm:$0xff]
        %v954 = vld [vmem:[#allocation5 + $0x408] sm:$0xff]
        %v955 = vld [vmem:[#allocation5 + $0x410] sm:$0xff]
        %v956 = vld [vmem:[#allocation5 + $0x418] sm:$0xff]
        %v957 = vld [vmem:[#allocation5 + $0x420] sm:$0xff]
        %v958 = vld [vmem:[#allocation5 + $0x428] sm:$0xff]
        %v959 = vld [vmem:[#allocation5 + $0x430] sm:$0xff]
        %v960 = vld [vmem:[#allocation5 + $0x438] sm:$0xff]
        %v961 = vld [vmem:[#allocation5 + $0x440] sm:$0xff]
        %v962 = vld [vmem:[#allocation5 + $0x448] sm:$0xff]
        %v963 = vld [vmem:[#allocation5 + $0x450] sm:$0xff]
        %v964 = vld [vmem:[#allocation5 + $0x458] sm:$0xff]
        %v965 = vld [vmem:[#allocation5 + $0x460] sm:$0xff]
        %v966 = vld [vmem:[#allocation5 + $0x468] sm:$0xff]
        %v967 = vld [vmem:[#allocation5 + $0x470] sm:$0xff]
        %v968 = vld [vmem:[#allocation5 + $0x478] sm:$0xff]
        %v969 = vld [vmem:[%s4] sm:$0x1]
        %v971 = vperm.slane %v969, 0
        %973 = vmatpush.msra.mxu0 %v840
        %974 = vmatpush.msra.mxu0 %v839
        %975 = vmatpush.msra.mxu0 %v838
        %976 = vmatpush.msra.mxu0 %v837
        %977 = vmatpush.msra.mxu0 %v836
        %978 = vmatpush.msra.mxu0 %v835
        %979 = vmatpush.msra.mxu0 %v834
        %980 = vmatpush.msra.mxu0 %v833
        %981 = vmatpush.msra.mxu0 %v832
        %982 = vmatpush.msra.mxu0 %v831
        %983 = vmatpush.msra.mxu0 %v830
        %984 = vmatpush.msra.mxu0 %v829
        %985 = vmatpush.msra.mxu0 %v828
        %986 = vmatpush.msra.mxu0 %v827
        %987 = vmatpush.msra.mxu0 %v826
        %988 = vmatpush.msra.mxu0 %v825
        %989 = vmatmul.f32.gmra.mxu0 %v776
        %v990 = vpop.f32.mrf.mxu0
        %v991 = vadd.f32 %v971, %v990
        %992 = vmatmul.f32.gmra.mxu0 %v777
        %v993 = vpop.f32.mrf.mxu0
        %v994 = vadd.f32 %v971, %v993
        %995 = vdwg.mxu0
        %996 = vmatpush.msra.mxu0 %v856
        %997 = vmatpush.msra.mxu0 %v855
        %998 = vmatpush.msra.mxu0 %v854
        %999 = vmatpush.msra.mxu0 %v853
        %1000 = vmatpush.msra.mxu0 %v852
        %1001 = vmatpush.msra.mxu0 %v851
        %1002 = vmatpush.msra.mxu0 %v850
        %1003 = vmatpush.msra.mxu0 %v849
        %1004 = vmatpush.msra.mxu0 %v848
        %1005 = vmatpush.msra.mxu0 %v847
        %1006 = vmatpush.msra.mxu0 %v846
        %1007 = vmatpush.msra.mxu0 %v845
        %1008 = vmatpush.msra.mxu0 %v844
        %1009 = vmatpush.msra.mxu0 %v843
        %1010 = vmatpush.msra.mxu0 %v842
        %1011 = vmatpush.msra.mxu0 %v841
        %1012 = vmatmul.f32.gmra.mxu0 %v769
        %v1013 = vpop.f32.mrf.mxu0
        %v1014 = vadd.f32 %v991, %v1013
        %1015 = vmatmul.f32.gmra.mxu0 %v770
        %v1016 = vpop.f32.mrf.mxu0
        %v1017 = vadd.f32 %v994, %v1016
        %1018 = vdwg.mxu0
        %1019 = vmatpush.msra.mxu0 %v872
        %1020 = vmatpush.msra.mxu0 %v871
        %1021 = vmatpush.msra.mxu0 %v870
        %1022 = vmatpush.msra.mxu0 %v869
        %1023 = vmatpush.msra.mxu0 %v868
        %1024 = vmatpush.msra.mxu0 %v867
        %1025 = vmatpush.msra.mxu0 %v866
        %1026 = vmatpush.msra.mxu0 %v865
        %1027 = vmatpush.msra.mxu0 %v864
        %1028 = vmatpush.msra.mxu0 %v863
        %1029 = vmatpush.msra.mxu0 %v862
        %1030 = vmatpush.msra.mxu0 %v861
        %1031 = vmatpush.msra.mxu0 %v860
        %1032 = vmatpush.msra.mxu0 %v859
        %1033 = vmatpush.msra.mxu0 %v858
        %1034 = vmatpush.msra.mxu0 %v857
        %1035 = vmatmul.f32.gmra.mxu0 %v782
        %v1036 = vpop.f32.mrf.mxu0
        %v1037 = vadd.f32 %v1014, %v1036
        %1038 = vmatmul.f32.gmra.mxu0 %v783
        %v1039 = vpop.f32.mrf.mxu0
        %v1040 = vadd.f32 %v1017, %v1039
        %1041 = vdwg.mxu0
        %1042 = vmatpush.msra.mxu0 %v888
        %1043 = vmatpush.msra.mxu0 %v887
        %1044 = vmatpush.msra.mxu0 %v886
        %1045 = vmatpush.msra.mxu0 %v885
        %1046 = vmatpush.msra.mxu0 %v884
        %1047 = vmatpush.msra.mxu0 %v883
        %1048 = vmatpush.msra.mxu0 %v882
        %1049 = vmatpush.msra.mxu0 %v881
        %1050 = vmatpush.msra.mxu0 %v880
        %1051 = vmatpush.msra.mxu0 %v879
        %1052 = vmatpush.msra.mxu0 %v878
        %1053 = vmatpush.msra.mxu0 %v877
        %1054 = vmatpush.msra.mxu0 %v876
        %1055 = vmatpush.msra.mxu0 %v875
        %1056 = vmatpush.msra.mxu0 %v874
        %1057 = vmatpush.msra.mxu0 %v873
        %1058 = vmatmul.f32.gmra.mxu0 %v798
        %v1059 = vpop.f32.mrf.mxu0
        %v1060 = vadd.f32 %v1037, %v1059
        %1061 = vmatmul.f32.gmra.mxu0 %v799
        %v1062 = vpop.f32.mrf.mxu0
        %v1063 = vadd.f32 %v1040, %v1062
        %1064 = vdwg.mxu0
        %1065 = vmatpush.msra.mxu0 %v904
        %1066 = vmatpush.msra.mxu0 %v903
        %1067 = vmatpush.msra.mxu0 %v902
        %1068 = vmatpush.msra.mxu0 %v901
        %1069 = vmatpush.msra.mxu0 %v900
        %1070 = vmatpush.msra.mxu0 %v899
        %1071 = vmatpush.msra.mxu0 %v898
        %1072 = vmatpush.msra.mxu0 %v897
        %1073 = vmatpush.msra.mxu0 %v896
        %1074 = vmatpush.msra.mxu0 %v895
        %1075 = vmatpush.msra.mxu0 %v894
        %1076 = vmatpush.msra.mxu0 %v893
        %1077 = vmatpush.msra.mxu0 %v892
        %1078 = vmatpush.msra.mxu0 %v891
        %1079 = vmatpush.msra.mxu0 %v890
        %1080 = vmatpush.msra.mxu0 %v889
        %1081 = vmatmul.f32.gmra.mxu0 %v789
        %v1082 = vpop.f32.mrf.mxu0
        %v1083 = vadd.f32 %v1060, %v1082
        %1084 = vmatmul.f32.gmra.mxu0 %v791
        %v1085 = vpop.f32.mrf.mxu0
        %v1086 = vadd.f32 %v1063, %v1085
        %1087 = vdwg.mxu0
        %1088 = vmatpush.msra.mxu0 %v920
        %1089 = vmatpush.msra.mxu0 %v919
        %1090 = vmatpush.msra.mxu0 %v918
        %1091 = vmatpush.msra.mxu0 %v917
        %1092 = vmatpush.msra.mxu0 %v916
        %1093 = vmatpush.msra.mxu0 %v915
        %1094 = vmatpush.msra.mxu0 %v914
        %1095 = vmatpush.msra.mxu0 %v913
        %1096 = vmatpush.msra.mxu0 %v912
        %1097 = vmatpush.msra.mxu0 %v911
        %1098 = vmatpush.msra.mxu0 %v910
        %1099 = vmatpush.msra.mxu0 %v909
        %1100 = vmatpush.msra.mxu0 %v908
        %1101 = vmatpush.msra.mxu0 %v907
        %1102 = vmatpush.msra.mxu0 %v906
        %1103 = vmatpush.msra.mxu0 %v905
        %1104 = vmatmul.f32.gmra.mxu0 %v804
        %v1105 = vpop.f32.mrf.mxu0
        %v1106 = vadd.f32 %v1083, %v1105
        %1107 = vmatmul.f32.gmra.mxu0 %v805
        %v1108 = vpop.f32.mrf.mxu0
        %v1109 = vadd.f32 %v1086, %v1108
        %1110 = vdwg.mxu0
        %1111 = vmatpush.msra.mxu0 %v936
        %1112 = vmatpush.msra.mxu0 %v935
        %1113 = vmatpush.msra.mxu0 %v934
        %1114 = vmatpush.msra.mxu0 %v933
        %1115 = vmatpush.msra.mxu0 %v932
        %1116 = vmatpush.msra.mxu0 %v931
        %1117 = vmatpush.msra.mxu0 %v930
        %1118 = vmatpush.msra.mxu0 %v929
        %1119 = vmatpush.msra.mxu0 %v928
        %1120 = vmatpush.msra.mxu0 %v927
        %1121 = vmatpush.msra.mxu0 %v926
        %1122 = vmatpush.msra.mxu0 %v925
        %1123 = vmatpush.msra.mxu0 %v924
        %1124 = vmatpush.msra.mxu0 %v923
        %1125 = vmatpush.msra.mxu0 %v922
        %1126 = vmatpush.msra.mxu0 %v921
        %1127 = vmatmul.f32.gmra.mxu0 %v817
        %v1128 = vpop.f32.mrf.mxu0
        %v1129 = vadd.f32 %v1106, %v1128
        %1130 = vmatmul.f32.gmra.mxu0 %v818
        %v1131 = vpop.f32.mrf.mxu0
        %v1132 = vadd.f32 %v1109, %v1131
        %1133 = vdwg.mxu0
        %1134 = vmatpush.msra.mxu0 %v952
        %1135 = vmatpush.msra.mxu0 %v951
        %1136 = vmatpush.msra.mxu0 %v950
        %1137 = vmatpush.msra.mxu0 %v949
        %1138 = vmatpush.msra.mxu0 %v948
        %1139 = vmatpush.msra.mxu0 %v947
        %1140 = vmatpush.msra.mxu0 %v946
        %1141 = vmatpush.msra.mxu0 %v945
        %1142 = vmatpush.msra.mxu0 %v944
        %1143 = vmatpush.msra.mxu0 %v943
        %1144 = vmatpush.msra.mxu0 %v942
        %1145 = vmatpush.msra.mxu0 %v941
        %1146 = vmatpush.msra.mxu0 %v940
        %1147 = vmatpush.msra.mxu0 %v939
        %1148 = vmatpush.msra.mxu0 %v938
        %1149 = vmatpush.msra.mxu0 %v937
        %1150 = vmatmul.f32.gmra.mxu0 %v808
        %v1151 = vpop.f32.mrf.mxu0
        %v1152 = vadd.f32 %v1129, %v1151
        %1153 = vmatmul.f32.gmra.mxu0 %v810
        %v1154 = vpop.f32.mrf.mxu0
        %v1155 = vadd.f32 %v1132, %v1154
        %1156 = vdwg.mxu0
        %1157 = vmatpush.msra.mxu0 %v968
        %1158 = vmatpush.msra.mxu0 %v967
        %1159 = vmatpush.msra.mxu0 %v966
        %1160 = vmatpush.msra.mxu0 %v965
        %1161 = vmatpush.msra.mxu0 %v964
        %1162 = vmatpush.msra.mxu0 %v963
        %1163 = vmatpush.msra.mxu0 %v962
        %1164 = vmatpush.msra.mxu0 %v961
        %1165 = vmatpush.msra.mxu0 %v960
        %1166 = vmatpush.msra.mxu0 %v959
        %1167 = vmatpush.msra.mxu0 %v958
        %1168 = vmatpush.msra.mxu0 %v957
        %1169 = vmatpush.msra.mxu0 %v956
        %1170 = vmatpush.msra.mxu0 %v955
        %1171 = vmatpush.msra.mxu0 %v954
        %1172 = vmatpush.msra.mxu0 %v953
        %1173 = vmatmul.f32.gmra.mxu0 %v823
        %v1174 = vpop.f32.mrf.mxu0
        %v1175 = vadd.f32 %v1152, %v1174
        %1176 = vmatmul.f32.gmra.mxu0 %v824
        %v1177 = vpop.f32.mrf.mxu0
        %v1178 = vadd.f32 %v1155, %v1177
        %1179 = vdwg.mxu0
        %v1180 = vadd.f32 %v1175, %v336
        %v1181 = vadd.f32 %v1178, %v338
        %v1182 = vmax.f32 %v1180, 0.0
        %v1183 = vmax.f32 %v1181, 0.0
        %1184 = vst [vmem:[%s265] sm:$0xff] %v1182
        %1185 = vst [vmem:[%s265 + $0x8] sm:$0xff] %v1183
        %s1186 = sand.u32 %s153, 1
        %s1187 = scalar_lea.sflag [#allocation4], %s1186
        %s1188 = sand.u32 %s153, 1
        %s1189 = smul.addr %s1188, 16
        %s1190 = scalar_lea.vmem [#allocation7], %s1189
        // Predicated region
        $region49: #{tpu_custom_call.1} parent=39 // pred_check
          %p1191 = pneg %p163
        $region50: #{tpu_custom_call.1} parent=39 // pred_check_branch
          %1193 = sbr.rel (%p1191) target = $region52
        $region51: #{tpu_custom_call.1} parent=39 // pred_region
          %s1194 = smul.u32 2, %s26
          %1196 = vsyncadd %s1187, 0
          %s1197 = smul.addr %s25, 2
          %s1198 = sadd.s32 %s1194, %s1197
          %s1199 = smul.addr %s1198, 8
          %s1200 = scalar_lea.hbm %s5, %s1199
          %s1201 = sshll.u32 %s1190, 4
          %s1202 = int_to_ptr.vmem [resolvable:$true] %s1201
          %s1203 = sshll.u32 %s1200, 4
          %s1204 = int_to_ptr.hbm [resolvable:$true] %s1203
          %1209 = dma.vmem_to_hbm [thread:$0]  %s1202, 256, %s1204, %s1187, 128, 128, 8
        $region52: #{tpu_custom_call.1} parent=39 // pred_fallthru
          _
      $region40: #{tpu_custom_call.1} parent=5 // pred_fallthru
        _
      %p1210 = scmp.le.s32.totalorder 2, %s16
      // Predicated region
      $region53: #{tpu_custom_call.1} parent=5 // pred_check
        %p1211 = pneg %p1210
      $region54: #{tpu_custom_call.1} parent=5 // pred_check_branch
        %1213 = sbr.rel (%p1211) target = $region56
      $region55: #{tpu_custom_call.1} parent=5 // pred_region
        %s1214 = ssub.s32 %s16, 2
        // Predicated region
        $region57: #{tpu_custom_call.1} parent=55 // pred_check
          %p1215 = pneg %p169
        $region58: #{tpu_custom_call.1} parent=55 // pred_check_branch
          %1217 = sbr.rel (%p1215) target = $region60
        $region59: #{tpu_custom_call.1} parent=55 // pred_region
          %s1218 = sand.u32 %s154, 1
          %s1219 = scalar_lea.sflag [#allocation4], %s1218
          %s1220 = sand.u32 %s154, 1
          %s1221 = smul.addr %s1220, 16
          %s1222 = scalar_lea.vmem [#allocation7], %s1221
          %1224 = dma.done %s1219, 256
        $region60: #{tpu_custom_call.1} parent=55 // pred_fallthru
          _
      $region56: #{tpu_custom_call.1} parent=5 // pred_fallthru
        _
    $region6: #{tpu_custom_call.1} parent=1 // loop_footer
      %s20 = sadd.s32 1, %s16
    $region7: #{tpu_custom_call.1} parent=1 // loop_footer_branch
      %15 = sbr.rel target = $region3
    $region8: #{tpu_custom_call.1} parent=1 // loop_exit
      _
    %1225 = vsyncpa [#allocation3], 1
    %s1226 = scalar_lea.sflag [#allocation3], 1
    %1227 = vsyncpa %s1226, 1
    %1228 = vsyncpa [#allocation6], 1
    %1229 = vsyncpa [#allocation4], 1
    %s1230 = scalar_lea.sflag [#allocation4], 1
    %1231 = vsyncpa %s1230, 1

</llo_original>
